<compile_context>
chip_gen: v7x
topology: tpu7x:2x2x1
jax: 0.10.0
libtpu: 0.0.40
codegen_flags: <defaults>
</compile_context>

<pallas_src>
import functools
import math

import jax
import jax.numpy as jnp
from jax import lax
from jax.experimental import pallas as pl
from jax.experimental.pallas import tpu as pltpu


def _rmsnorm(x, g, eps):
    ms = jnp.mean(x * x, axis=-1, keepdims=True)
    return x * lax.rsqrt(ms + eps) * g


def _gelu_tanh(x):
    # tanh-approximate GELU: one EUP tanh next to the FFN matmuls (max |err| ~1e-3 vs erf).
    c = math.sqrt(2.0 / math.pi)
    return 0.5 * x * (1.0 + jnp.tanh(c * (x + 0.044715 * (x * x * x))))


def transformer_block_kernel(x_ref, g1_ref, wq_ref, wk_ref, wv_ref, wo_ref,
                             g2_ref, w1_ref, w2_ref, o_ref,
                             q_scr, k_scr, v_scr,
                             *, num_heads, d_k, tq, eps):
    f32 = jnp.float32
    bf16 = jnp.bfloat16
    T, D = x_ref.shape
    qi = pl.program_id(1)
    q_start = pl.multiple_of(qi * tq, tq)
    scale = 1.0 / math.sqrt(d_k)

    # ---- once per batch element (qi == 0): ln1 + Q/K/V projections into scratch ----
    # Scratch layout is head-batched (H, T, d_k) bf16; Q carries the 1/sqrt(d_k) scale.
    @pl.when(qi == 0)
    def _():
        xn = _rmsnorm(x_ref[...], g1_ref[...], eps).astype(bf16)
        qf = jnp.dot(xn, wq_ref[...], preferred_element_type=f32) * scale
        kf = jnp.dot(xn, wk_ref[...], preferred_element_type=f32)
        vf = jnp.dot(xn, wv_ref[...], preferred_element_type=f32)
        for h in range(num_heads):                      # static, once per batch
            sl = slice(h * d_k, (h + 1) * d_k)
            q_scr[h] = qf[:, sl].astype(bf16)
            k_scr[h] = kf[:, sl].astype(bf16)
            v_scr[h] = vf[:, sl].astype(bf16)

    # ---- sublayer 1: x + attn(ln1(x)), causal, flash-style over KV blocks [0, qi] ----
    q_blk = q_scr[:, pl.ds(q_start, tq), :]             # (H, tq, d_k) bf16
    k_diag = k_scr[:, pl.ds(q_start, tq), :]
    v_diag = v_scr[:, pl.ds(q_start, tq), :]

    # Diagonal block: the only block that needs the triangular mask (f32 scores => -1e30
    # is safe; exp underflows to exactly 0).
    s = jnp.einsum("hqd,hkd->hqk", q_blk, k_diag, preferred_element_type=f32)
    row = lax.broadcasted_iota(jnp.int32, (tq, tq), 0)
    col = lax.broadcasted_iota(jnp.int32, (tq, tq), 1)
    s = s + jnp.where(col > row, jnp.float32(-1e30), jnp.float32(0.0))
    m = jnp.max(s, axis=-1, keepdims=True)               # (H, tq, 1)
    e = jnp.exp(s - m)
    l = jnp.sum(e, axis=-1, keepdims=True)
    acc = jnp.einsum("hqk,hkd->hqd", e.astype(bf16), v_diag,
                     preferred_element_type=f32)          # (H, tq, d_k)

    # Strictly-lower blocks: unmasked, online-softmax update.  Blocks > qi are never
    # touched (causal FLOP skip).
    def kv_step(j, carry):
        m, l, acc = carry
        start = pl.multiple_of(j * tq, tq)
        k_b = k_scr[:, pl.ds(start, tq), :]
        v_b = v_scr[:, pl.ds(start, tq), :]
        s = jnp.einsum("hqd,hkd->hqk", q_blk, k_b, preferred_element_type=f32)
        m_new = jnp.maximum(m, jnp.max(s, axis=-1, keepdims=True))
        alpha = jnp.exp(m - m_new)
        p = jnp.exp(s - m_new)
        l_new = alpha * l + jnp.sum(p, axis=-1, keepdims=True)
        acc_new = alpha * acc + jnp.einsum("hqk,hkd->hqd", p.astype(bf16), v_b,
                                           preferred_element_type=f32)
        return m_new, l_new, acc_new

    m, l, acc = lax.fori_loop(0, qi, kv_step, (m, l, acc))

    ctx = (acc / l).astype(bf16)                          # exact normalization, tiny tensor

    # Fold per-head context straight into the output projection: lane-dense (tq, D)
    # accumulation, no ctx scratch / masked d_k-wide stores.
    attn = None
    for h in range(num_heads):
        part = jnp.dot(ctx[h], wo_ref[h * d_k:(h + 1) * d_k, :],
                       preferred_element_type=f32)
        attn = part if attn is None else attn + part

    x_q = x_ref[pl.ds(q_start, tq), :]                    # residual (f32, resident block)
    x1 = x_q + attn                                       # resid dropout p=0 -> identity

    # ---- sublayer 2: x1 + ffn(ln2(x1)) ----
    xn2 = _rmsnorm(x1, g2_ref[...], eps).astype(bf16)
    h1 = jnp.dot(xn2, w1_ref[...], preferred_element_type=f32)
    h1 = _gelu_tanh(h1).astype(bf16)
    ff = jnp.dot(h1, w2_ref[...], preferred_element_type=f32)

    o_ref[...] = x1 + ff


def _vmem_capacity_bytes():
    try:
        return int(pltpu.get_tpu_info().vmem_capacity_bytes)
    except Exception:
        return 64 << 20   # conservative (v7x-sized) fallback


def _pick_q_tile(T, vmem_cap):
    """Largest query tile (multiple of 16) dividing T; generation-aware cap."""
    cap = 256 if (vmem_cap <= (64 << 20) and T >= 2048) else 512
    if T <= cap:
        return T
    for tq in range(cap, 15, -1):
        if T % tq == 0 and tq % 16 == 0:
            return tq
    # TODO(synk): pad T with a masked tail instead of falling back to a full-T tile.
    return T


def transformer_block(x, params, *, num_heads, eps=1e-5, q_tile=None):
    B, T, D = x.shape
    d_ff = params["w1_t"].shape[1]
    assert D % num_heads == 0
    d_k = D // num_heads

    vmem_cap = _vmem_capacity_bytes()
    tq = q_tile if q_tile is not None else _pick_q_tile(T, vmem_cap)
    assert T % tq == 0
    n_q = T // tq

    bf16 = jnp.bfloat16
    wq = params["wq_t"].astype(bf16)
    wk = params["wk_t"].astype(bf16)
    wv = params["wv_t"].astype(bf16)
    wo = params["wo_t"].astype(bf16)
    w1 = params["w1_t"].astype(bf16)
    w2 = params["w2_t"].astype(bf16)

    rep2d = lambda shape: pl.BlockSpec(shape, lambda b, qi: (0, 0))

    kernel = functools.partial(transformer_block_kernel,
                               num_heads=num_heads, d_k=d_k, tq=tq, eps=eps)

    # Scoped-VMEM budget from actual block sizes, capped generation-aware (never plan
    # above ~80% of physical VMEM -- 64 MiB on v7x, 128 MiB on v5e/v6e).
    dk_pad = -(-d_k // 128) * 128
    t_pad = -(-T // 16) * 16
    est = (
        2 * (4 * D * D + 2 * D * d_ff) * 2                    # bf16 weights (double-buffered)
        + 2 * T * D * 4 + 2 * tq * D * 4                      # x / out blocks (f32, 2-deep)
        + 3 * num_heads * t_pad * dk_pad * 2                  # q/k/v scratch (lane-padded)
        + (3 * num_heads * tq * tq                            # score / exp / p
           + num_heads * tq * (dk_pad + 2)                    # acc, m, l
           + 2 * tq * d_ff + 8 * tq * D + 2 * T * D) * 4)     # FFN hidden + misc live f32
    cap = max(int(vmem_cap * 0.8), 32 << 20)
    vmem_bytes = int(min(max(2 * est, 32 << 20), cap))

    return pl.pallas_call(
        kernel,
        out_shape=jax.ShapeDtypeStruct((B, T, D), jnp.float32),
        grid_spec=pltpu.PrefetchScalarGridSpec(
            num_scalar_prefetch=0,
            grid=(B, n_q),
            in_specs=[
                pl.BlockSpec((pl.Squeezed(), T, D), lambda b, qi: (b, 0, 0)),  # x (full seq)
                rep2d((1, D)),          # ln1 gain
                rep2d((D, D)),          # Wq^T
                rep2d((D, D)),          # Wk^T
                rep2d((D, D)),          # Wv^T
                rep2d((D, D)),          # Wo^T
                rep2d((1, D)),          # ln2 gain
                rep2d((D, d_ff)),       # W1^T
                rep2d((d_ff, D)),       # W2^T
            ],
            out_specs=pl.BlockSpec((pl.Squeezed(), tq, D), lambda b, qi: (b, qi, 0)),
            scratch_shapes=[
                pltpu.VMEM((num_heads, T, d_k), jnp.bfloat16),   # Q (pre-scaled)
                pltpu.VMEM((num_heads, T, d_k), jnp.bfloat16),   # K
                pltpu.VMEM((num_heads, T, d_k), jnp.bfloat16),   # V
            ],
        ),
        compiler_params=pltpu.CompilerParams(
            # qi must be "arbitrary": the K/V/Q scratch written at qi==0 persists across
            # the sequential qi iterations of each batch element.
            dimension_semantics=("parallel", "arbitrary"),
            vmem_limit_bytes=vmem_bytes),
    )(x, params["g1"], wq, wk, wv, wo, params["g2"], w1, w2)


def transformer_block_ref(x, params, *, num_heads, eps=1e-5):
    """Pure-JAX f32 reference matching the PyTorch forward (dropout p=0, exact erf GELU)."""
    B, T, D = x.shape
    d_k = D // num_heads

    def rms(x, g):
        return x / jnp.sqrt(jnp.mean(x ** 2, axis=-1, keepdims=True) + eps) * g

    xn = rms(x, params["g1"][0])
    q = xn @ params["wq_t"]
    k = xn @ params["wk_t"]
    v = xn @ params["wv_t"]
    q = q.reshape(B, T, num_heads, d_k).transpose(0, 2, 1, 3)
    k = k.reshape(B, T, num_heads, d_k).transpose(0, 2, 1, 3)
    v = v.reshape(B, T, num_heads, d_k).transpose(0, 2, 1, 3)
    s = jnp.einsum("bhqd,bhkd->bhqk", q, k) / jnp.sqrt(d_k)
    mask = jnp.triu(jnp.ones((T, T), bool), k=1)
    s = jnp.where(mask, -jnp.inf, s)
    p = jax.nn.softmax(s, axis=-1)
    a = jnp.einsum("bhqk,bhkd->bhqd", p, v).transpose(0, 2, 1, 3).reshape(B, T, D)
    x1 = x + a @ params["wo_t"]

    xn2 = rms(x1, params["g2"][0])
    h = xn2 @ params["w1_t"]
    h = 0.5 * h * (1 + jax.scipy.special.erf(h / jnp.sqrt(2.0)))
    return x1 + h @ params["w2_t"]


if __name__ == "__main__":
    # Small shapes; q_tile=16 with T=32 exercises multiple query tiles, the persistent
    # K/V scratch, and the causal KV-block loop.
    B, T, d_model, num_heads, d_ff = 2, 32, 32, 4, 64

    key = jax.random.PRNGKey(0)
    kx, kq, kk, kv, ko, k1, k2 = jax.random.split(key, 7)
    x = jax.random.normal(kx, (B, T, d_model), jnp.float32)

    def w(k, shape):
        return 0.02 * jax.random.normal(k, shape, jnp.float32)

    params = {
        "g1": jnp.ones((1, d_model), jnp.float32),        # RMSNorm init = ones
        "g2": jnp.ones((1, d_model), jnp.float32),
        "wq_t": w(kq, (d_model, d_model)),                # (in, out) = W.T
        "wk_t": w(kk, (d_model, d_model)),
        "wv_t": w(kv, (d_model, d_model)),
        "wo_t": w(ko, (d_model, d_model)),
        "w1_t": w(k1, (d_model, d_ff)),
        "w2_t": w(k2, (d_ff, d_model)),
    }

    out = transformer_block(x, params, num_heads=num_heads, q_tile=16)
    out = jax.block_until_ready(out)

    ref = transformer_block_ref(x, params, num_heads=num_heads)
    assert out.shape == (B, T, d_model)
    max_err = float(jnp.max(jnp.abs(out - ref)))
    # bf16 MXU operands + tanh-GELU => small bounded deviation from the f32 reference
    assert jnp.allclose(out, ref, atol=5e-3, rtol=5e-3), max_err

    print("KERNEL_OK")
</pallas_src>

<mosaic_0001>
module attributes {stable_mosaic.version = 11 : i64} {
  func.func @transformer_block_kernel(%arg0: i32, %arg1: i32, %arg2: memref<1x32x32xf32, #tpu.memory_space<vmem>>, %arg3: memref<1x32xf32, #tpu.memory_space<vmem>>, %arg4: memref<32x32xbf16, #tpu.memory_space<vmem>>, %arg5: memref<32x32xbf16, #tpu.memory_space<vmem>>, %arg6: memref<32x32xbf16, #tpu.memory_space<vmem>>, %arg7: memref<32x32xbf16, #tpu.memory_space<vmem>>, %arg8: memref<1x32xf32, #tpu.memory_space<vmem>>, %arg9: memref<32x64xbf16, #tpu.memory_space<vmem>>, %arg10: memref<64x32xbf16, #tpu.memory_space<vmem>>, %arg11: memref<1x16x32xf32, #tpu.memory_space<vmem>>, %arg12: memref<4x32x8xbf16, #tpu.memory_space<vmem>>, %arg13: memref<4x32x8xbf16, #tpu.memory_space<vmem>>, %arg14: memref<4x32x8xbf16, #tpu.memory_space<vmem>>) attributes {dimension_semantics = [#tpu.dimension_semantics<parallel>, #tpu.dimension_semantics<arbitrary>], iteration_bounds = array<i64: 2, 2>, scalar_prefetch = 0 : i64, scratch_operands = 3 : i64, tpu.core_type = #tpu.core_type<tc>, window_params = [{transform_indices = @transform_0, window_bounds = array<i64: 1, 32, 32>}, {pipeline_mode = #tpu.pipeline_mode<synchronous>, transform_indices = @transform_1, window_bounds = array<i64: 1, 32>}, {pipeline_mode = #tpu.pipeline_mode<synchronous>, transform_indices = @transform_2, window_bounds = array<i64: 32, 32>}, {pipeline_mode = #tpu.pipeline_mode<synchronous>, transform_indices = @transform_3, window_bounds = array<i64: 32, 32>}, {pipeline_mode = #tpu.pipeline_mode<synchronous>, transform_indices = @transform_4, window_bounds = array<i64: 32, 32>}, {pipeline_mode = #tpu.pipeline_mode<synchronous>, transform_indices = @transform_5, window_bounds = array<i64: 32, 32>}, {pipeline_mode = #tpu.pipeline_mode<synchronous>, transform_indices = @transform_6, window_bounds = array<i64: 1, 32>}, {pipeline_mode = #tpu.pipeline_mode<synchronous>, transform_indices = @transform_7, window_bounds = array<i64: 32, 64>}, {pipeline_mode = #tpu.pipeline_mode<synchronous>, transform_indices = @transform_8, window_bounds = array<i64: 64, 32>}, {transform_indices = @transform_9, window_bounds = array<i64: 1, 16, 32>}]} {
    %c16_i32 = arith.constant 16 : i32
    %0 = arith.muli %arg1, %c16_i32 : i32
    %1 = tpu.assume_multiple %0, 16 : i32
    %c0_i32 = arith.constant 0 : i32
    %2 = arith.cmpi eq, %arg1, %c0_i32 : i32
    %3 = arith.extui %2 : i1 to i32
    %c0_i32_0 = arith.constant 0 : i32
    %4 = arith.cmpi ne, %3, %c0_i32_0 : i32
    scf.if %4 {
      %c0_41 = arith.constant 0 : index
      %c0_42 = arith.constant 0 : index
      %c0_43 = arith.constant 0 : index
      %95 = vector.load %arg2[%c0_41, %c0_42, %c0_43] : memref<1x32x32xf32, #tpu.memory_space<vmem>>, vector<1x32x32xf32>
      %96 = vector.shape_cast %95 : vector<1x32x32xf32> to vector<32x32xf32>
      %c0_44 = arith.constant 0 : index
      %c0_45 = arith.constant 0 : index
      %97 = vector.load %arg3[%c0_44, %c0_45] : memref<1x32xf32, #tpu.memory_space<vmem>>, vector<1x32xf32>
      %98 = arith.mulf %96, %96 : vector<32x32xf32>
      %cst_46 = arith.constant dense<0.000000e+00> : vector<32xf32>
      %99 = vector.multi_reduction <add>, %98, %cst_46 [1] : vector<32x32xf32> to vector<32xf32>
      %100 = vector.shape_cast %99 : vector<32xf32> to vector<32x1xf32>
      %cst_47 = arith.constant 3.200000e+01 : f32
      %101 = vector.broadcast %cst_47 : f32 to vector<32x1xf32>
      %102 = arith.divf %100, %101 : vector<32x1xf32>
      %cst_48 = arith.constant 9.99999974E-6 : f32
      %103 = vector.broadcast %cst_48 : f32 to vector<32x1xf32>
      %104 = arith.addf %102, %103 : vector<32x1xf32>
      %105 = math.rsqrt %104 : vector<32x1xf32>
      %106 = vector.broadcast %105 : vector<32x1xf32> to vector<32x32xf32>
      %107 = arith.mulf %96, %106 : vector<32x32xf32>
      %108 = vector.broadcast %97 : vector<1x32xf32> to vector<32x32xf32>
      %109 = arith.mulf %107, %108 : vector<32x32xf32>
      %110 = arith.truncf %109 : vector<32x32xf32> to vector<32x32xbf16>
      %c0_49 = arith.constant 0 : index
      %c0_50 = arith.constant 0 : index
      %111 = vector.load %arg4[%c0_49, %c0_50] : memref<32x32xbf16, #tpu.memory_space<vmem>>, vector<32x32xbf16>
      %cst_51 = arith.constant dense<0.000000e+00> : vector<32x32xf32>
      %112 = tpu.matmul %110, %111, %cst_51 {dimension_numbers = #tpu.dot_dimension_numbers<[1], [0], [0], [1], [0, 0, 1, 1], [], []>} : vector<32x32xbf16>, vector<32x32xbf16>, vector<32x32xf32> -> vector<32x32xf32>
      %cst_52 = arith.constant 0.353553385 : f32
      %113 = vector.broadcast %cst_52 : f32 to vector<32x32xf32>
      %114 = arith.mulf %112, %113 : vector<32x32xf32>
      %c0_53 = arith.constant 0 : index
      %c0_54 = arith.constant 0 : index
      %115 = vector.load %arg5[%c0_53, %c0_54] : memref<32x32xbf16, #tpu.memory_space<vmem>>, vector<32x32xbf16>
      %cst_55 = arith.constant dense<0.000000e+00> : vector<32x32xf32>
      %116 = tpu.matmul %110, %115, %cst_55 {dimension_numbers = #tpu.dot_dimension_numbers<[1], [0], [0], [1], [0, 0, 1, 1], [], []>} : vector<32x32xbf16>, vector<32x32xbf16>, vector<32x32xf32> -> vector<32x32xf32>
      %c0_56 = arith.constant 0 : index
      %c0_57 = arith.constant 0 : index
      %117 = vector.load %arg6[%c0_56, %c0_57] : memref<32x32xbf16, #tpu.memory_space<vmem>>, vector<32x32xbf16>
      %cst_58 = arith.constant dense<0.000000e+00> : vector<32x32xf32>
      %118 = tpu.matmul %110, %117, %cst_58 {dimension_numbers = #tpu.dot_dimension_numbers<[1], [0], [0], [1], [0, 0, 1, 1], [], []>} : vector<32x32xbf16>, vector<32x32xbf16>, vector<32x32xf32> -> vector<32x32xf32>
      %119 = vector.extract_strided_slice %114 {offsets = [0, 0], sizes = [32, 8], strides = [1, 1]} : vector<32x32xf32> to vector<32x8xf32>
      %120 = arith.truncf %119 : vector<32x8xf32> to vector<32x8xbf16>
      %c0_59 = arith.constant 0 : index
      %c0_60 = arith.constant 0 : index
      %c0_61 = arith.constant 0 : index
      %121 = vector.load %arg12[%c0_59, %c0_60, %c0_61] : memref<4x32x8xbf16, #tpu.memory_space<vmem>>, vector<1x32x8xbf16>
      %122 = vector.shape_cast %121 : vector<1x32x8xbf16> to vector<32x8xbf16>
      %123 = vector.shape_cast %120 : vector<32x8xbf16> to vector<1x32x8xbf16>
      tpu.vector_store %arg12[%c0_59, %c0_60, %c0_61], %123 {strides = array<i32>} : memref<4x32x8xbf16, #tpu.memory_space<vmem>>, vector<1x32x8xbf16>,
      %124 = vector.extract_strided_slice %116 {offsets = [0, 0], sizes = [32, 8], strides = [1, 1]} : vector<32x32xf32> to vector<32x8xf32>
      %125 = arith.truncf %124 : vector<32x8xf32> to vector<32x8xbf16>
      %c0_62 = arith.constant 0 : index
      %c0_63 = arith.constant 0 : index
      %c0_64 = arith.constant 0 : index
      %126 = vector.load %arg13[%c0_62, %c0_63, %c0_64] : memref<4x32x8xbf16, #tpu.memory_space<vmem>>, vector<1x32x8xbf16>
      %127 = vector.shape_cast %126 : vector<1x32x8xbf16> to vector<32x8xbf16>
      %128 = vector.shape_cast %125 : vector<32x8xbf16> to vector<1x32x8xbf16>
      tpu.vector_store %arg13[%c0_62, %c0_63, %c0_64], %128 {strides = array<i32>} : memref<4x32x8xbf16, #tpu.memory_space<vmem>>, vector<1x32x8xbf16>,
      %129 = vector.extract_strided_slice %118 {offsets = [0, 0], sizes = [32, 8], strides = [1, 1]} : vector<32x32xf32> to vector<32x8xf32>
      %130 = arith.truncf %129 : vector<32x8xf32> to vector<32x8xbf16>
      %c0_65 = arith.constant 0 : index
      %c0_66 = arith.constant 0 : index
      %c0_67 = arith.constant 0 : index
      %131 = vector.load %arg14[%c0_65, %c0_66, %c0_67] : memref<4x32x8xbf16, #tpu.memory_space<vmem>>, vector<1x32x8xbf16>
      %132 = vector.shape_cast %131 : vector<1x32x8xbf16> to vector<32x8xbf16>
      %133 = vector.shape_cast %130 : vector<32x8xbf16> to vector<1x32x8xbf16>
      tpu.vector_store %arg14[%c0_65, %c0_66, %c0_67], %133 {strides = array<i32>} : memref<4x32x8xbf16, #tpu.memory_space<vmem>>, vector<1x32x8xbf16>,
      %134 = vector.extract_strided_slice %114 {offsets = [0, 8], sizes = [32, 8], strides = [1, 1]} : vector<32x32xf32> to vector<32x8xf32>
      %135 = arith.truncf %134 : vector<32x8xf32> to vector<32x8xbf16>
      %c1 = arith.constant 1 : index
      %c0_68 = arith.constant 0 : index
      %c0_69 = arith.constant 0 : index
      %136 = vector.load %arg12[%c1, %c0_68, %c0_69] : memref<4x32x8xbf16, #tpu.memory_space<vmem>>, vector<1x32x8xbf16>
      %137 = vector.shape_cast %136 : vector<1x32x8xbf16> to vector<32x8xbf16>
      %138 = vector.shape_cast %135 : vector<32x8xbf16> to vector<1x32x8xbf16>
      tpu.vector_store %arg12[%c1, %c0_68, %c0_69], %138 {strides = array<i32>} : memref<4x32x8xbf16, #tpu.memory_space<vmem>>, vector<1x32x8xbf16>,
      %139 = vector.extract_strided_slice %116 {offsets = [0, 8], sizes = [32, 8], strides = [1, 1]} : vector<32x32xf32> to vector<32x8xf32>
      %140 = arith.truncf %139 : vector<32x8xf32> to vector<32x8xbf16>
      %c1_70 = arith.constant 1 : index
      %c0_71 = arith.constant 0 : index
      %c0_72 = arith.constant 0 : index
      %141 = vector.load %arg13[%c1_70, %c0_71, %c0_72] : memref<4x32x8xbf16, #tpu.memory_space<vmem>>, vector<1x32x8xbf16>
      %142 = vector.shape_cast %141 : vector<1x32x8xbf16> to vector<32x8xbf16>
      %143 = vector.shape_cast %140 : vector<32x8xbf16> to vector<1x32x8xbf16>
      tpu.vector_store %arg13[%c1_70, %c0_71, %c0_72], %143 {strides = array<i32>} : memref<4x32x8xbf16, #tpu.memory_space<vmem>>, vector<1x32x8xbf16>,
      %144 = vector.extract_strided_slice %118 {offsets = [0, 8], sizes = [32, 8], strides = [1, 1]} : vector<32x32xf32> to vector<32x8xf32>
      %145 = arith.truncf %144 : vector<32x8xf32> to vector<32x8xbf16>
      %c1_73 = arith.constant 1 : index
      %c0_74 = arith.constant 0 : index
      %c0_75 = arith.constant 0 : index
      %146 = vector.load %arg14[%c1_73, %c0_74, %c0_75] : memref<4x32x8xbf16, #tpu.memory_space<vmem>>, vector<1x32x8xbf16>
      %147 = vector.shape_cast %146 : vector<1x32x8xbf16> to vector<32x8xbf16>
      %148 = vector.shape_cast %145 : vector<32x8xbf16> to vector<1x32x8xbf16>
      tpu.vector_store %arg14[%c1_73, %c0_74, %c0_75], %148 {strides = array<i32>} : memref<4x32x8xbf16, #tpu.memory_space<vmem>>, vector<1x32x8xbf16>,
      %149 = vector.extract_strided_slice %114 {offsets = [0, 16], sizes = [32, 8], strides = [1, 1]} : vector<32x32xf32> to vector<32x8xf32>
      %150 = arith.truncf %149 : vector<32x8xf32> to vector<32x8xbf16>
      %c2 = arith.constant 2 : index
      %c0_76 = arith.constant 0 : index
      %c0_77 = arith.constant 0 : index
      %151 = vector.load %arg12[%c2, %c0_76, %c0_77] : memref<4x32x8xbf16, #tpu.memory_space<vmem>>, vector<1x32x8xbf16>
      %152 = vector.shape_cast %151 : vector<1x32x8xbf16> to vector<32x8xbf16>
      %153 = vector.shape_cast %150 : vector<32x8xbf16> to vector<1x32x8xbf16>
      tpu.vector_store %arg12[%c2, %c0_76, %c0_77], %153 {strides = array<i32>} : memref<4x32x8xbf16, #tpu.memory_space<vmem>>, vector<1x32x8xbf16>,
      %154 = vector.extract_strided_slice %116 {offsets = [0, 16], sizes = [32, 8], strides = [1, 1]} : vector<32x32xf32> to vector<32x8xf32>
      %155 = arith.truncf %154 : vector<32x8xf32> to vector<32x8xbf16>
      %c2_78 = arith.constant 2 : index
      %c0_79 = arith.constant 0 : index
      %c0_80 = arith.constant 0 : index
      %156 = vector.load %arg13[%c2_78, %c0_79, %c0_80] : memref<4x32x8xbf16, #tpu.memory_space<vmem>>, vector<1x32x8xbf16>
      %157 = vector.shape_cast %156 : vector<1x32x8xbf16> to vector<32x8xbf16>
      %158 = vector.shape_cast %155 : vector<32x8xbf16> to vector<1x32x8xbf16>
      tpu.vector_store %arg13[%c2_78, %c0_79, %c0_80], %158 {strides = array<i32>} : memref<4x32x8xbf16, #tpu.memory_space<vmem>>, vector<1x32x8xbf16>,
      %159 = vector.extract_strided_slice %118 {offsets = [0, 16], sizes = [32, 8], strides = [1, 1]} : vector<32x32xf32> to vector<32x8xf32>
      %160 = arith.truncf %159 : vector<32x8xf32> to vector<32x8xbf16>
      %c2_81 = arith.constant 2 : index
      %c0_82 = arith.constant 0 : index
      %c0_83 = arith.constant 0 : index
      %161 = vector.load %arg14[%c2_81, %c0_82, %c0_83] : memref<4x32x8xbf16, #tpu.memory_space<vmem>>, vector<1x32x8xbf16>
      %162 = vector.shape_cast %161 : vector<1x32x8xbf16> to vector<32x8xbf16>
      %163 = vector.shape_cast %160 : vector<32x8xbf16> to vector<1x32x8xbf16>
      tpu.vector_store %arg14[%c2_81, %c0_82, %c0_83], %163 {strides = array<i32>} : memref<4x32x8xbf16, #tpu.memory_space<vmem>>, vector<1x32x8xbf16>,
      %164 = vector.extract_strided_slice %114 {offsets = [0, 24], sizes = [32, 8], strides = [1, 1]} : vector<32x32xf32> to vector<32x8xf32>
      %165 = arith.truncf %164 : vector<32x8xf32> to vector<32x8xbf16>
      %c3 = arith.constant 3 : index
      %c0_84 = arith.constant 0 : index
      %c0_85 = arith.constant 0 : index
      %166 = vector.load %arg12[%c3, %c0_84, %c0_85] : memref<4x32x8xbf16, #tpu.memory_space<vmem>>, vector<1x32x8xbf16>
      %167 = vector.shape_cast %166 : vector<1x32x8xbf16> to vector<32x8xbf16>
      %168 = vector.shape_cast %165 : vector<32x8xbf16> to vector<1x32x8xbf16>
      tpu.vector_store %arg12[%c3, %c0_84, %c0_85], %168 {strides = array<i32>} : memref<4x32x8xbf16, #tpu.memory_space<vmem>>, vector<1x32x8xbf16>,
      %169 = vector.extract_strided_slice %116 {offsets = [0, 24], sizes = [32, 8], strides = [1, 1]} : vector<32x32xf32> to vector<32x8xf32>
      %170 = arith.truncf %169 : vector<32x8xf32> to vector<32x8xbf16>
      %c3_86 = arith.constant 3 : index
      %c0_87 = arith.constant 0 : index
      %c0_88 = arith.constant 0 : index
      %171 = vector.load %arg13[%c3_86, %c0_87, %c0_88] : memref<4x32x8xbf16, #tpu.memory_space<vmem>>, vector<1x32x8xbf16>
      %172 = vector.shape_cast %171 : vector<1x32x8xbf16> to vector<32x8xbf16>
      %173 = vector.shape_cast %170 : vector<32x8xbf16> to vector<1x32x8xbf16>
      tpu.vector_store %arg13[%c3_86, %c0_87, %c0_88], %173 {strides = array<i32>} : memref<4x32x8xbf16, #tpu.memory_space<vmem>>, vector<1x32x8xbf16>,
      %174 = vector.extract_strided_slice %118 {offsets = [0, 24], sizes = [32, 8], strides = [1, 1]} : vector<32x32xf32> to vector<32x8xf32>
      %175 = arith.truncf %174 : vector<32x8xf32> to vector<32x8xbf16>
      %c3_89 = arith.constant 3 : index
      %c0_90 = arith.constant 0 : index
      %c0_91 = arith.constant 0 : index
      %176 = vector.load %arg14[%c3_89, %c0_90, %c0_91] : memref<4x32x8xbf16, #tpu.memory_space<vmem>>, vector<1x32x8xbf16>
      %177 = vector.shape_cast %176 : vector<1x32x8xbf16> to vector<32x8xbf16>
      %178 = vector.shape_cast %175 : vector<32x8xbf16> to vector<1x32x8xbf16>
      tpu.vector_store %arg14[%c3_89, %c0_90, %c0_91], %178 {strides = array<i32>} : memref<4x32x8xbf16, #tpu.memory_space<vmem>>, vector<1x32x8xbf16>,
    } else {
    }
    %c0 = arith.constant 0 : index
    %5 = arith.index_cast %1 : i32 to index
    %c0_1 = arith.constant 0 : index
    %6 = vector.load %arg12[%c0, %5, %c0_1] : memref<4x32x8xbf16, #tpu.memory_space<vmem>>, vector<4x16x8xbf16>
    %c0_2 = arith.constant 0 : index
    %7 = arith.index_cast %1 : i32 to index
    %c0_3 = arith.constant 0 : index
    %8 = vector.load %arg13[%c0_2, %7, %c0_3] : memref<4x32x8xbf16, #tpu.memory_space<vmem>>, vector<4x16x8xbf16>
    %c0_4 = arith.constant 0 : index
    %9 = arith.index_cast %1 : i32 to index
    %c0_5 = arith.constant 0 : index
    %10 = vector.load %arg14[%c0_4, %9, %c0_5] : memref<4x32x8xbf16, #tpu.memory_space<vmem>>, vector<4x16x8xbf16>
    "tpu.trace_start"() <{level = 10 : i32, message = "hqd,hkd->hqk"}> : () -> ()
    %cst = arith.constant dense<0.000000e+00> : vector<4x16x16xf32>
    %11 = tpu.matmul %6, %8, %cst {dimension_numbers = #tpu.dot_dimension_numbers<[2], [2], [1], [1], [0, 0, 0, 1, 1, 1], [0], [0]>} : vector<4x16x8xbf16>, vector<4x16x8xbf16>, vector<4x16x16xf32> -> vector<4x16x16xf32>
    "tpu.trace_stop"() : () -> ()
    %12 = tpu.iota {dimensions = array<i32: 0>} : vector<16x16xi32>
    %13 = tpu.iota {dimensions = array<i32: 1>} : vector<16x16xi32>
    %14 = arith.cmpi sgt, %13, %12 : vector<16x16xi32>
    %cst_6 = arith.constant -1.000000e+30 : f32
    %cst_7 = arith.constant 0.000000e+00 : f32
    %15 = vector.broadcast %cst_6 : f32 to vector<16x16xf32>
    %16 = vector.broadcast %cst_7 : f32 to vector<16x16xf32>
    %17 = arith.select %14, %15, %16 : vector<16x16xi1>, vector<16x16xf32>
    %18 = vector.shape_cast %17 : vector<16x16xf32> to vector<1x16x16xf32>
    %19 = vector.broadcast %18 : vector<1x16x16xf32> to vector<4x16x16xf32>
    %20 = arith.addf %11, %19 : vector<4x16x16xf32>
    %cst_8 = arith.constant dense<0xFF800000> : vector<4x16xf32>
    %21 = vector.multi_reduction <maximumf>, %20, %cst_8 [2] : vector<4x16x16xf32> to vector<4x16xf32>
    %22 = vector.shape_cast %21 : vector<4x16xf32> to vector<4x16x1xf32>
    %23 = vector.broadcast %22 : vector<4x16x1xf32> to vector<4x16x16xf32>
    %24 = arith.subf %20, %23 : vector<4x16x16xf32>
    %25 = math.exp %24 : vector<4x16x16xf32>
    %cst_9 = arith.constant dense<0.000000e+00> : vector<4x16xf32>
    %26 = vector.multi_reduction <add>, %25, %cst_9 [2] : vector<4x16x16xf32> to vector<4x16xf32>
    %27 = vector.shape_cast %26 : vector<4x16xf32> to vector<4x16x1xf32>
    %28 = arith.truncf %25 : vector<4x16x16xf32> to vector<4x16x16xbf16>
    "tpu.trace_start"() <{level = 10 : i32, message = "hqk,hkd->hqd"}> : () -> ()
    %cst_10 = arith.constant dense<0.000000e+00> : vector<4x16x8xf32>
    %29 = tpu.matmul %28, %10, %cst_10 {dimension_numbers = #tpu.dot_dimension_numbers<[2], [1], [1], [2], [0, 0, 0, 1, 1, 2], [0], [0]>} : vector<4x16x16xbf16>, vector<4x16x8xbf16>, vector<4x16x8xf32> -> vector<4x16x8xf32>
    %c0_i32_11 = arith.constant 0 : i32
    "tpu.trace_stop"() : () -> ()
    %30 = arith.subi %arg1, %c0_i32_11 : i32
    %31 = arith.addi %c0_i32_11, %30 : i32
    %c1_i32 = arith.constant 1 : i32
    %32:3 = scf.for %arg15 = %c0_i32_11 to %31 step %c1_i32 iter_args(%arg16 = %22, %arg17 = %27, %arg18 = %29) -> (vector<4x16x1xf32>, vector<4x16x1xf32>, vector<4x16x8xf32>)  : i32 {
      %c16_i32_41 = arith.constant 16 : i32
      %95 = arith.muli %arg15, %c16_i32_41 : i32
      %96 = tpu.assume_multiple %95, 16 : i32
      %c0_42 = arith.constant 0 : index
      %97 = arith.index_cast %96 : i32 to index
      %c0_43 = arith.constant 0 : index
      %98 = vector.load %arg13[%c0_42, %97, %c0_43] : memref<4x32x8xbf16, #tpu.memory_space<vmem>>, vector<4x16x8xbf16>
      %c0_44 = arith.constant 0 : index
      %99 = arith.index_cast %96 : i32 to index
      %c0_45 = arith.constant 0 : index
      %100 = vector.load %arg14[%c0_44, %99, %c0_45] : memref<4x32x8xbf16, #tpu.memory_space<vmem>>, vector<4x16x8xbf16>
      "tpu.trace_start"() <{level = 10 : i32, message = "hqd,hkd->hqk"}> : () -> ()
      %cst_46 = arith.constant dense<0.000000e+00> : vector<4x16x16xf32>
      %101 = tpu.matmul %6, %98, %cst_46 {dimension_numbers = #tpu.dot_dimension_numbers<[2], [2], [1], [1], [0, 0, 0, 1, 1, 1], [0], [0]>} : vector<4x16x8xbf16>, vector<4x16x8xbf16>, vector<4x16x16xf32> -> vector<4x16x16xf32>
      "tpu.trace_stop"() : () -> ()
      %cst_47 = arith.constant dense<0xFF800000> : vector<4x16xf32>
      %102 = vector.multi_reduction <maximumf>, %101, %cst_47 [2] : vector<4x16x16xf32> to vector<4x16xf32>
      %103 = vector.shape_cast %102 : vector<4x16xf32> to vector<4x16x1xf32>
      %104 = arith.maximumf %arg16, %103 : vector<4x16x1xf32>
      %105 = arith.subf %arg16, %104 : vector<4x16x1xf32>
      %106 = math.exp %105 : vector<4x16x1xf32>
      %107 = vector.broadcast %104 : vector<4x16x1xf32> to vector<4x16x16xf32>
      %108 = arith.subf %101, %107 : vector<4x16x16xf32>
      %109 = math.exp %108 : vector<4x16x16xf32>
      %110 = arith.mulf %106, %arg17 : vector<4x16x1xf32>
      %cst_48 = arith.constant dense<0.000000e+00> : vector<4x16xf32>
      %111 = vector.multi_reduction <add>, %109, %cst_48 [2] : vector<4x16x16xf32> to vector<4x16xf32>
      %112 = vector.shape_cast %111 : vector<4x16xf32> to vector<4x16x1xf32>
      %113 = arith.addf %110, %112 : vector<4x16x1xf32>
      %114 = vector.broadcast %106 : vector<4x16x1xf32> to vector<4x16x8xf32>
      %115 = arith.mulf %114, %arg18 : vector<4x16x8xf32>
      %116 = arith.truncf %109 : vector<4x16x16xf32> to vector<4x16x16xbf16>
      "tpu.trace_start"() <{level = 10 : i32, message = "hqk,hkd->hqd"}> : () -> ()
      %cst_49 = arith.constant dense<0.000000e+00> : vector<4x16x8xf32>
      %117 = tpu.matmul %116, %100, %cst_49 {dimension_numbers = #tpu.dot_dimension_numbers<[2], [1], [1], [2], [0, 0, 0, 1, 1, 2], [0], [0]>} : vector<4x16x16xbf16>, vector<4x16x8xbf16>, vector<4x16x8xf32> -> vector<4x16x8xf32>
      "tpu.trace_stop"() : () -> ()
      %118 = arith.addf %115, %117 : vector<4x16x8xf32>
      scf.yield %104, %113, %118 : vector<4x16x1xf32>, vector<4x16x1xf32>, vector<4x16x8xf32>
    }
    %33 = vector.broadcast %32#1 : vector<4x16x1xf32> to vector<4x16x8xf32>
    %34 = arith.divf %32#2, %33 : vector<4x16x8xf32>
    %35 = arith.truncf %34 : vector<4x16x8xf32> to vector<4x16x8xbf16>
    %36 = vector.extract_strided_slice %35 {offsets = [0, 0, 0], sizes = [1, 16, 8], strides = [1, 1, 1]} : vector<4x16x8xbf16> to vector<1x16x8xbf16>
    %37 = vector.shape_cast %36 : vector<1x16x8xbf16> to vector<16x8xbf16>
    %c0_12 = arith.constant 0 : index
    %c0_13 = arith.constant 0 : index
    %38 = vector.load %arg7[%c0_12, %c0_13] : memref<32x32xbf16, #tpu.memory_space<vmem>>, vector<8x32xbf16>
    %cst_14 = arith.constant dense<0.000000e+00> : vector<16x32xf32>
    %39 = tpu.matmul %37, %38, %cst_14 {dimension_numbers = #tpu.dot_dimension_numbers<[1], [0], [0], [1], [0, 0, 1, 1], [], []>} : vector<16x8xbf16>, vector<8x32xbf16>, vector<16x32xf32> -> vector<16x32xf32>
    %40 = vector.extract_strided_slice %35 {offsets = [1, 0, 0], sizes = [1, 16, 8], strides = [1, 1, 1]} : vector<4x16x8xbf16> to vector<1x16x8xbf16>
    %41 = vector.shape_cast %40 : vector<1x16x8xbf16> to vector<16x8xbf16>
    %c8 = arith.constant 8 : index
    %c0_15 = arith.constant 0 : index
    %42 = vector.load %arg7[%c8, %c0_15] : memref<32x32xbf16, #tpu.memory_space<vmem>>, vector<8x32xbf16>
    %cst_16 = arith.constant dense<0.000000e+00> : vector<16x32xf32>
    %43 = tpu.matmul %41, %42, %cst_16 {dimension_numbers = #tpu.dot_dimension_numbers<[1], [0], [0], [1], [0, 0, 1, 1], [], []>} : vector<16x8xbf16>, vector<8x32xbf16>, vector<16x32xf32> -> vector<16x32xf32>
    %44 = arith.addf %39, %43 : vector<16x32xf32>
    %45 = vector.extract_strided_slice %35 {offsets = [2, 0, 0], sizes = [1, 16, 8], strides = [1, 1, 1]} : vector<4x16x8xbf16> to vector<1x16x8xbf16>
    %46 = vector.shape_cast %45 : vector<1x16x8xbf16> to vector<16x8xbf16>
    %c16 = arith.constant 16 : index
    %c0_17 = arith.constant 0 : index
    %47 = vector.load %arg7[%c16, %c0_17] : memref<32x32xbf16, #tpu.memory_space<vmem>>, vector<8x32xbf16>
    %cst_18 = arith.constant dense<0.000000e+00> : vector<16x32xf32>
    %48 = tpu.matmul %46, %47, %cst_18 {dimension_numbers = #tpu.dot_dimension_numbers<[1], [0], [0], [1], [0, 0, 1, 1], [], []>} : vector<16x8xbf16>, vector<8x32xbf16>, vector<16x32xf32> -> vector<16x32xf32>
    %49 = arith.addf %44, %48 : vector<16x32xf32>
    %50 = vector.extract_strided_slice %35 {offsets = [3, 0, 0], sizes = [1, 16, 8], strides = [1, 1, 1]} : vector<4x16x8xbf16> to vector<1x16x8xbf16>
    %51 = vector.shape_cast %50 : vector<1x16x8xbf16> to vector<16x8xbf16>
    %c24 = arith.constant 24 : index
    %c0_19 = arith.constant 0 : index
    %52 = vector.load %arg7[%c24, %c0_19] : memref<32x32xbf16, #tpu.memory_space<vmem>>, vector<8x32xbf16>
    %cst_20 = arith.constant dense<0.000000e+00> : vector<16x32xf32>
    %53 = tpu.matmul %51, %52, %cst_20 {dimension_numbers = #tpu.dot_dimension_numbers<[1], [0], [0], [1], [0, 0, 1, 1], [], []>} : vector<16x8xbf16>, vector<8x32xbf16>, vector<16x32xf32> -> vector<16x32xf32>
    %54 = arith.addf %49, %53 : vector<16x32xf32>
    %c0_21 = arith.constant 0 : index
    %55 = arith.index_cast %1 : i32 to index
    %c0_22 = arith.constant 0 : index
    %56 = vector.load %arg2[%c0_21, %55, %c0_22] : memref<1x32x32xf32, #tpu.memory_space<vmem>>, vector<1x16x32xf32>
    %57 = vector.shape_cast %56 : vector<1x16x32xf32> to vector<16x32xf32>
    %58 = arith.addf %57, %54 : vector<16x32xf32>
    %c0_23 = arith.constant 0 : index
    %c0_24 = arith.constant 0 : index
    %59 = vector.load %arg8[%c0_23, %c0_24] : memref<1x32xf32, #tpu.memory_space<vmem>>, vector<1x32xf32>
    %60 = arith.mulf %58, %58 : vector<16x32xf32>
    %cst_25 = arith.constant dense<0.000000e+00> : vector<16xf32>
    %61 = vector.multi_reduction <add>, %60, %cst_25 [1] : vector<16x32xf32> to vector<16xf32>
    %62 = vector.shape_cast %61 : vector<16xf32> to vector<16x1xf32>
    %cst_26 = arith.constant 3.200000e+01 : f32
    %63 = vector.broadcast %cst_26 : f32 to vector<16x1xf32>
    %64 = arith.divf %62, %63 : vector<16x1xf32>
    %cst_27 = arith.constant 9.99999974E-6 : f32
    %65 = vector.broadcast %cst_27 : f32 to vector<16x1xf32>
    %66 = arith.addf %64, %65 : vector<16x1xf32>
    %67 = math.rsqrt %66 : vector<16x1xf32>
    %68 = vector.broadcast %67 : vector<16x1xf32> to vector<16x32xf32>
    %69 = arith.mulf %58, %68 : vector<16x32xf32>
    %70 = vector.broadcast %59 : vector<1x32xf32> to vector<16x32xf32>
    %71 = arith.mulf %69, %70 : vector<16x32xf32>
    %72 = arith.truncf %71 : vector<16x32xf32> to vector<16x32xbf16>
    %c0_28 = arith.constant 0 : index
    %c0_29 = arith.constant 0 : index
    %73 = vector.load %arg9[%c0_28, %c0_29] : memref<32x64xbf16, #tpu.memory_space<vmem>>, vector<32x64xbf16>
    %cst_30 = arith.constant dense<0.000000e+00> : vector<16x64xf32>
    %74 = tpu.matmul %72, %73, %cst_30 {dimension_numbers = #tpu.dot_dimension_numbers<[1], [0], [0], [1], [0, 0, 1, 1], [], []>} : vector<16x32xbf16>, vector<32x64xbf16>, vector<16x64xf32> -> vector<16x64xf32>
    %cst_31 = arith.constant 5.000000e-01 : f32
    %75 = vector.broadcast %cst_31 : f32 to vector<16x64xf32>
    %76 = arith.mulf %75, %74 : vector<16x64xf32>
    %77 = arith.mulf %74, %74 : vector<16x64xf32>
    %78 = arith.mulf %77, %74 : vector<16x64xf32>
    %cst_32 = arith.constant 4.471500e-02 : f32
    %79 = vector.broadcast %cst_32 : f32 to vector<16x64xf32>
    %80 = arith.mulf %79, %78 : vector<16x64xf32>
    %81 = arith.addf %74, %80 : vector<16x64xf32>
    %cst_33 = arith.constant 0.797884583 : f32
    %82 = vector.broadcast %cst_33 : f32 to vector<16x64xf32>
    %83 = arith.mulf %82, %81 : vector<16x64xf32>
    %84 = math.tanh %83 : vector<16x64xf32>
    %cst_34 = arith.constant 1.000000e+00 : f32
    %85 = vector.broadcast %cst_34 : f32 to vector<16x64xf32>
    %86 = arith.addf %85, %84 : vector<16x64xf32>
    %87 = arith.mulf %76, %86 : vector<16x64xf32>
    %88 = arith.truncf %87 : vector<16x64xf32> to vector<16x64xbf16>
    %c0_35 = arith.constant 0 : index
    %c0_36 = arith.constant 0 : index
    %89 = vector.load %arg10[%c0_35, %c0_36] : memref<64x32xbf16, #tpu.memory_space<vmem>>, vector<64x32xbf16>
    %cst_37 = arith.constant dense<0.000000e+00> : vector<16x32xf32>
    %90 = tpu.matmul %88, %89, %cst_37 {dimension_numbers = #tpu.dot_dimension_numbers<[1], [0], [0], [1], [0, 0, 1, 1], [], []>} : vector<16x64xbf16>, vector<64x32xbf16>, vector<16x32xf32> -> vector<16x32xf32>
    %91 = arith.addf %58, %90 : vector<16x32xf32>
    %c0_38 = arith.constant 0 : index
    %c0_39 = arith.constant 0 : index
    %c0_40 = arith.constant 0 : index
    %92 = vector.load %arg11[%c0_38, %c0_39, %c0_40] : memref<1x16x32xf32, #tpu.memory_space<vmem>>, vector<1x16x32xf32>
    %93 = vector.shape_cast %92 : vector<1x16x32xf32> to vector<16x32xf32>
    %94 = vector.shape_cast %91 : vector<16x32xf32> to vector<1x16x32xf32>
    tpu.vector_store %arg11[%c0_38, %c0_39, %c0_40], %94 {strides = array<i32>} : memref<1x16x32xf32, #tpu.memory_space<vmem>>, vector<1x16x32xf32>,
    return
  }
  func.func @transform_0(%arg0: i32, %arg1: i32) -> (i32, i32, i32) {
    %c0_i32 = arith.constant 0 : i32
    %c0_i32_0 = arith.constant 0 : i32
    %c0_i32_1 = arith.constant 0 : i32
    return %arg0, %c0_i32, %c0_i32_0 : i32, i32, i32
  }
  func.func @transform_1(%arg0: i32, %arg1: i32) -> (i32, i32) {
    %c0_i32 = arith.constant 0 : i32
    %c0_i32_0 = arith.constant 0 : i32
    %c0_i32_1 = arith.constant 0 : i32
    return %c0_i32, %c0_i32_0 : i32, i32
  }
  func.func @transform_2(%arg0: i32, %arg1: i32) -> (i32, i32) {
    %c0_i32 = arith.constant 0 : i32
    %c0_i32_0 = arith.constant 0 : i32
    %c0_i32_1 = arith.constant 0 : i32
    return %c0_i32, %c0_i32_0 : i32, i32
  }
  func.func @transform_3(%arg0: i32, %arg1: i32) -> (i32, i32) {
    %c0_i32 = arith.constant 0 : i32
    %c0_i32_0 = arith.constant 0 : i32
    %c0_i32_1 = arith.constant 0 : i32
    return %c0_i32, %c0_i32_0 : i32, i32
  }
  func.func @transform_4(%arg0: i32, %arg1: i32) -> (i32, i32) {
    %c0_i32 = arith.constant 0 : i32
    %c0_i32_0 = arith.constant 0 : i32
    %c0_i32_1 = arith.constant 0 : i32
    return %c0_i32, %c0_i32_0 : i32, i32
  }
  func.func @transform_5(%arg0: i32, %arg1: i32) -> (i32, i32) {
    %c0_i32 = arith.constant 0 : i32
    %c0_i32_0 = arith.constant 0 : i32
    %c0_i32_1 = arith.constant 0 : i32
    return %c0_i32, %c0_i32_0 : i32, i32
  }
  func.func @transform_6(%arg0: i32, %arg1: i32) -> (i32, i32) {
    %c0_i32 = arith.constant 0 : i32
    %c0_i32_0 = arith.constant 0 : i32
    %c0_i32_1 = arith.constant 0 : i32
    return %c0_i32, %c0_i32_0 : i32, i32
  }
  func.func @transform_7(%arg0: i32, %arg1: i32) -> (i32, i32) {
    %c0_i32 = arith.constant 0 : i32
    %c0_i32_0 = arith.constant 0 : i32
    %c0_i32_1 = arith.constant 0 : i32
    return %c0_i32, %c0_i32_0 : i32, i32
  }
  func.func @transform_8(%arg0: i32, %arg1: i32) -> (i32, i32) {
    %c0_i32 = arith.constant 0 : i32
    %c0_i32_0 = arith.constant 0 : i32
    %c0_i32_1 = arith.constant 0 : i32
    return %c0_i32, %c0_i32_0 : i32, i32
  }
  func.func @transform_9(%arg0: i32, %arg1: i32) -> (i32, i32, i32) {
    %c0_i32 = arith.constant 0 : i32
    %c0_i32_0 = arith.constant 0 : i32
    return %arg0, %arg1, %c0_i32 : i32, i32, i32
  }
}

</mosaic_0001>

<llo_original>
// kernel: tpu_custom_call.1
$region0: #{tpu_custom_call.1}
  #allocation0 [shape = 'u32[]', space=smem, size = 0x4, offset = 0x4, fixed_abs, tag = 'smem constant byte address 0x4 - core index']
  #allocation1 [shape = 'u32[144,128]{1,0:T(1,128)}', space=vmem, size = 0x12000, scoped, tag = 'internal scratch']
  #allocation2 [shape = 'bf16[4,32,8]{2,1,0:T(16,128)(2,1)}', space=vmem, size = 0x8000, scoped, tag = 'scratch operand']
  #allocation3 [shape = 'bf16[4,32,8]{2,1,0:T(16,128)(2,1)}', space=vmem, size = 0x8000, scoped, tag = 'scratch operand']
  #allocation4 [shape = 'bf16[4,32,8]{2,1,0:T(16,128)(2,1)}', space=vmem, size = 0x8000, scoped, tag = 'scratch operand']
  %s0 = inlined_call_operand.hbm [shape: f32[2,32,32], index: 0, kind: input, shape index: {}]
  %s1 = inlined_call_operand.vmem [shape: f32[1,32], index: 1, kind: input, shape index: {}]
  %s2 = inlined_call_operand.vmem [shape: bf16[32,32], index: 2, kind: input, shape index: {}]
  %s3 = inlined_call_operand.vmem [shape: bf16[32,32], index: 3, kind: input, shape index: {}]
  %s4 = inlined_call_operand.vmem [shape: bf16[32,32], index: 4, kind: input, shape index: {}]
  %s5 = inlined_call_operand.hbm [shape: bf16[32,32], index: 5, kind: input, shape index: {}]
  %s6 = inlined_call_operand.vmem [shape: f32[1,32], index: 6, kind: input, shape index: {}]
  %s7 = inlined_call_operand.hbm [shape: bf16[32,64], index: 7, kind: input, shape index: {}]
  %s8 = inlined_call_operand.vmem [shape: bf16[64,32], index: 8, kind: input, shape index: {}]
  %s9 = inlined_call_operand.hbm [shape: f32[2,32,32], index: 9, kind: output, shape index: {}]
  %s10 = sld [smem:[#allocation0]]
  $region92: #{tpu_custom_call.1} parent=0
    _
  %s12 = ssub.s32 1, %s10
  %s13 = scalar_select 0, %s12, %s10
  $region1: #{tpu_custom_call.1} parent=0
    #allocation5 [shape = 'u8[32768]{0}', space=vmem, size = 0x8000, scoped, tag = 'input window, operand 0']
    #allocation6 [shape = 's32[2]{0}', space=sflag, size = 0x8, scoped, tag = 'scoped memory for tpu_custom_call.1']
    #allocation7 [shape = 's32[2]{0}', space=sflag, size = 0x8, scoped, tag = 'scoped memory for tpu_custom_call.1']
    #allocation8 [shape = 'u8[8192]{0}', space=vmem, size = 0x2000, scoped, tag = 'input window, operand 5, single buffered']
    #allocation9 [shape = 's32[1]{0}', space=sflag, size = 0x4, scoped, tag = 'scoped memory for tpu_custom_call.1']
    #allocation10 [shape = 'u8[8192]{0}', space=vmem, size = 0x2000, scoped, tag = 'input window, operand 7, single buffered']
    #allocation11 [shape = 'u8[16384]{0}', space=vmem, size = 0x4000, scoped, tag = 'output window, operand 0']
    %14 = vsyncpa [#allocation6], 0
    %s15 = scalar_lea.sflag [#allocation6], 1
    %16 = vsyncpa %s15, 0
    %17 = vsyncpa [#allocation9], 0
    %18 = vsyncpa [#allocation7], 0
    %s19 = scalar_lea.sflag [#allocation7], 1
    %20 = vsyncpa %s19, 0
    loop: start=0, step=1, limit=6
    $region2: #{tpu_custom_call.1} parent=1 // loop_pre_header
      _
    $region3: #{tpu_custom_call.1} parent=1 // loop_header
      %s22 = sphi 0, %s26
      %p23 = scmp.ge.s32.totalorder %s22, 6
      %s29 = sphi 0, %s41
      %s30 = sphi 0, %s37
      %s31 = sphi 0, %s29
      %s32 = sphi 0, %s30
      %s33 = sphi 0, %s31
      %s34 = sphi 0, %s32
      %s44 = sphi 0, %s46
      %s47 = sphi 0, %s44
      %s48 = sphi 0, %s47
      %s64 = sphi 0, %s48
      %s68 = sphi 0, %s68
      %s70 = sphi 0, %s68
      %s71 = sphi 0, %s70
      %s85 = sphi 0, %s71
      %s89 = sphi 0, %s89
      %s91 = sphi 0, %s89
      %s92 = sphi 0, %s91
      %s106 = sphi 0, %s92
      %s110 = sphi 0, %s110
      %s112 = sphi 0, %s110
      %s113 = sphi 0, %s112
      %s127 = sphi 0, %s113
      %s131 = sphi 0, %s131
      %s133 = sphi 0, %s131
      %s134 = sphi 0, %s133
      %s148 = sphi 0, %s134
      %s152 = sphi 0, %s152
      %s154 = sphi 0, %s152
      %s155 = sphi 0, %s154
      %s169 = sphi 0, %s155
      %s173 = sphi 0, %s173
      %s175 = sphi 0, %s173
      %s176 = sphi 0, %s175
      %s190 = sphi 0, %s176
      %s194 = sphi 0, %s194
      %s196 = sphi 0, %s194
      %s197 = sphi 0, %s196
      %s211 = sphi 0, %s197
      %s215 = sphi 0, %s215
      %s217 = sphi 0, %s215
      %s218 = sphi 0, %s217
      %s232 = sphi 0, %s218
      %s240 = sphi 0, %s242
      %s243 = sphi 0, %s240
      %s244 = sphi 0, %s243
      %s260 = sphi 0, %s244
    $region4: #{tpu_custom_call.1} parent=1 // loop_header_branch
      %25 = sbr.rel (%p23) target = $region8
    $region5: #{tpu_custom_call.1} parent=1 // loop_body
      %s27 = ssub.s32 %s22, 1
      %s28 = ssub.s32 %s22, 2
      %s35 = sadd.s32 1, %s30
      %p36 = scmp.ge.s32.totalorder %s35, 2
      %s37 = scalar_select %p36, 0, %s35
      %s38 = sadd.s32 1, %s29
      %s39 = scalar_select %p36, %s38, %s29
      %p40 = scmp.ge.s32.totalorder %s39, 2
      %s41 = scalar_select %p40, 0, %s39
      %s42 = ssub.s32 %s29, %s41
      %p43 = scmp.eq.s32.totalorder %s42, 0
      %s45 = sadd.s32 %s44, 1
      %s46 = scalar_select %p43, %s44, %s45
      %p49 = pneg %p43
      %p50 = scmp.eq.s32.totalorder %s22, 3
      %p51 = por %p49, %p50
      %p52 = scmp.ne.s32.totalorder %s44, %s47
      %p53 = scmp.eq.s32.totalorder %s22, 0
      %p54 = por %p52, %p53
      %p55 = scmp.ne.s32.totalorder %s44, %s47
      %p56 = scmp.eq.s32.totalorder %s27, 3
      %p57 = por %p55, %p56
      %p58 = scmp.ne.s32.totalorder %s47, %s48
      %p59 = scmp.eq.s32.totalorder %s27, 0
      %p60 = por %p58, %p59
      %p61 = scmp.ne.s32.totalorder %s47, %s48
      %p62 = scmp.eq.s32.totalorder %s28, 3
      %p63 = por %p61, %p62
      %p65 = scmp.ne.s32.totalorder %s48, %s64
      %p66 = scmp.eq.s32.totalorder %s28, 0
      %p67 = por %p65, %p66
      %s69 = sadd.s32 %s68, 1
      %p72 = scmp.eq.s32.totalorder %s22, 3
      %p73 = scmp.ne.s32.totalorder %s68, %s70
      %p74 = scmp.eq.s32.totalorder %s22, 0
      %p75 = por %p73, %p74
      %p76 = scmp.ne.s32.totalorder %s68, %s70
      %p77 = scmp.eq.s32.totalorder %s27, 3
      %p78 = por %p76, %p77
      %p79 = scmp.ne.s32.totalorder %s70, %s71
      %p80 = scmp.eq.s32.totalorder %s27, 0
      %p81 = por %p79, %p80
      %p82 = scmp.ne.s32.totalorder %s70, %s71
      %p83 = scmp.eq.s32.totalorder %s28, 3
      %p84 = por %p82, %p83
      %p86 = scmp.ne.s32.totalorder %s71, %s85
      %p87 = scmp.eq.s32.totalorder %s28, 0
      %p88 = por %p86, %p87
      %s90 = sadd.s32 %s89, 1
      %p93 = scmp.eq.s32.totalorder %s22, 3
      %p94 = scmp.ne.s32.totalorder %s89, %s91
      %p95 = scmp.eq.s32.totalorder %s22, 0
      %p96 = por %p94, %p95
      %p97 = scmp.ne.s32.totalorder %s89, %s91
      %p98 = scmp.eq.s32.totalorder %s27, 3
      %p99 = por %p97, %p98
      %p100 = scmp.ne.s32.totalorder %s91, %s92
      %p101 = scmp.eq.s32.totalorder %s27, 0
      %p102 = por %p100, %p101
      %p103 = scmp.ne.s32.totalorder %s91, %s92
      %p104 = scmp.eq.s32.totalorder %s28, 3
      %p105 = por %p103, %p104
      %p107 = scmp.ne.s32.totalorder %s92, %s106
      %p108 = scmp.eq.s32.totalorder %s28, 0
      %p109 = por %p107, %p108
      %s111 = sadd.s32 %s110, 1
      %p114 = scmp.eq.s32.totalorder %s22, 3
      %p115 = scmp.ne.s32.totalorder %s110, %s112
      %p116 = scmp.eq.s32.totalorder %s22, 0
      %p117 = por %p115, %p116
      %p118 = scmp.ne.s32.totalorder %s110, %s112
      %p119 = scmp.eq.s32.totalorder %s27, 3
      %p120 = por %p118, %p119
      %p121 = scmp.ne.s32.totalorder %s112, %s113
      %p122 = scmp.eq.s32.totalorder %s27, 0
      %p123 = por %p121, %p122
      %p124 = scmp.ne.s32.totalorder %s112, %s113
      %p125 = scmp.eq.s32.totalorder %s28, 3
      %p126 = por %p124, %p125
      %p128 = scmp.ne.s32.totalorder %s113, %s127
      %p129 = scmp.eq.s32.totalorder %s28, 0
      %p130 = por %p128, %p129
      %s132 = sadd.s32 %s131, 1
      %p135 = scmp.eq.s32.totalorder %s22, 3
      %p136 = scmp.ne.s32.totalorder %s131, %s133
      %p137 = scmp.eq.s32.totalorder %s22, 0
      %p138 = por %p136, %p137
      %p139 = scmp.ne.s32.totalorder %s131, %s133
      %p140 = scmp.eq.s32.totalorder %s27, 3
      %p141 = por %p139, %p140
      %p142 = scmp.ne.s32.totalorder %s133, %s134
      %p143 = scmp.eq.s32.totalorder %s27, 0
      %p144 = por %p142, %p143
      %p145 = scmp.ne.s32.totalorder %s133, %s134
      %p146 = scmp.eq.s32.totalorder %s28, 3
      %p147 = por %p145, %p146
      %p149 = scmp.ne.s32.totalorder %s134, %s148
      %p150 = scmp.eq.s32.totalorder %s28, 0
      %p151 = por %p149, %p150
      %s153 = sadd.s32 %s152, 1
      %p156 = scmp.eq.s32.totalorder %s22, 3
      %p157 = scmp.ne.s32.totalorder %s152, %s154
      %p158 = scmp.eq.s32.totalorder %s22, 0
      %p159 = por %p157, %p158
      %p160 = scmp.ne.s32.totalorder %s152, %s154
      %p161 = scmp.eq.s32.totalorder %s27, 3
      %p162 = por %p160, %p161
      %p163 = scmp.ne.s32.totalorder %s154, %s155
      %p164 = scmp.eq.s32.totalorder %s27, 0
      %p165 = por %p163, %p164
      %p166 = scmp.ne.s32.totalorder %s154, %s155
      %p167 = scmp.eq.s32.totalorder %s28, 3
      %p168 = por %p166, %p167
      %p170 = scmp.ne.s32.totalorder %s155, %s169
      %p171 = scmp.eq.s32.totalorder %s28, 0
      %p172 = por %p170, %p171
      %s174 = sadd.s32 %s173, 1
      %p177 = scmp.eq.s32.totalorder %s22, 3
      %p178 = scmp.ne.s32.totalorder %s173, %s175
      %p179 = scmp.eq.s32.totalorder %s22, 0
      %p180 = por %p178, %p179
      %p181 = scmp.ne.s32.totalorder %s173, %s175
      %p182 = scmp.eq.s32.totalorder %s27, 3
      %p183 = por %p181, %p182
      %p184 = scmp.ne.s32.totalorder %s175, %s176
      %p185 = scmp.eq.s32.totalorder %s27, 0
      %p186 = por %p184, %p185
      %p187 = scmp.ne.s32.totalorder %s175, %s176
      %p188 = scmp.eq.s32.totalorder %s28, 3
      %p189 = por %p187, %p188
      %p191 = scmp.ne.s32.totalorder %s176, %s190
      %p192 = scmp.eq.s32.totalorder %s28, 0
      %p193 = por %p191, %p192
      %s195 = sadd.s32 %s194, 1
      %p198 = scmp.eq.s32.totalorder %s22, 3
      %p199 = scmp.ne.s32.totalorder %s194, %s196
      %p200 = scmp.eq.s32.totalorder %s22, 0
      %p201 = por %p199, %p200
      %p202 = scmp.ne.s32.totalorder %s194, %s196
      %p203 = scmp.eq.s32.totalorder %s27, 3
      %p204 = por %p202, %p203
      %p205 = scmp.ne.s32.totalorder %s196, %s197
      %p206 = scmp.eq.s32.totalorder %s27, 0
      %p207 = por %p205, %p206
      %p208 = scmp.ne.s32.totalorder %s196, %s197
      %p209 = scmp.eq.s32.totalorder %s28, 3
      %p210 = por %p208, %p209
      %p212 = scmp.ne.s32.totalorder %s197, %s211
      %p213 = scmp.eq.s32.totalorder %s28, 0
      %p214 = por %p212, %p213
      %s216 = sadd.s32 %s215, 1
      %p219 = scmp.eq.s32.totalorder %s22, 3
      %p220 = scmp.ne.s32.totalorder %s215, %s217
      %p221 = scmp.eq.s32.totalorder %s22, 0
      %p222 = por %p220, %p221
      %p223 = scmp.ne.s32.totalorder %s215, %s217
      %p224 = scmp.eq.s32.totalorder %s27, 3
      %p225 = por %p223, %p224
      %p226 = scmp.ne.s32.totalorder %s217, %s218
      %p227 = scmp.eq.s32.totalorder %s27, 0
      %p228 = por %p226, %p227
      %p229 = scmp.ne.s32.totalorder %s217, %s218
      %p230 = scmp.eq.s32.totalorder %s28, 3
      %p231 = por %p229, %p230
      %p233 = scmp.ne.s32.totalorder %s218, %s232
      %p234 = scmp.eq.s32.totalorder %s28, 0
      %p235 = por %p233, %p234
      %s236 = ssub.s32 %s29, %s41
      %s237 = ssub.s32 %s30, %s37
      %s238 = sor.u32 %s236, %s237
      %p239 = scmp.eq.s32.totalorder %s238, 0
      %s241 = sadd.s32 %s240, 1
      %s242 = scalar_select %p239, %s240, %s241
      %p245 = pneg %p239
      %p246 = scmp.eq.s32.totalorder %s22, 3
      %p247 = por %p245, %p246
      %p248 = scmp.ne.s32.totalorder %s240, %s243
      %p249 = scmp.eq.s32.totalorder %s22, 0
      %p250 = por %p248, %p249
      %p251 = scmp.ne.s32.totalorder %s240, %s243
      %p252 = scmp.eq.s32.totalorder %s27, 3
      %p253 = por %p251, %p252
      %p254 = scmp.ne.s32.totalorder %s243, %s244
      %p255 = scmp.eq.s32.totalorder %s27, 0
      %p256 = por %p254, %p255
      %p257 = scmp.ne.s32.totalorder %s243, %s244
      %p258 = scmp.eq.s32.totalorder %s28, 3
      %p259 = por %p257, %p258
      %p261 = scmp.ne.s32.totalorder %s244, %s260
      %p262 = scmp.eq.s32.totalorder %s28, 0
      %p263 = por %p261, %p262
      %p264 = scmp.le.s32.totalorder 1, %s22
      %p265 = scmp.lt.s32.totalorder %s22, 5
      %p266 = pnand %p264, %p265
      %p267 = pneg %p266
      // Predicated region
      $region9: #{tpu_custom_call.1} parent=5 // pred_check
        _
      $region10: #{tpu_custom_call.1} parent=5 // pred_check_branch
        %269 = sbr.rel (%p266) target = $region12
      $region11: #{tpu_custom_call.1} parent=5 // pred_region
        %s270 = ssub.s32 %s22, 1
        // Predicated region
        $region13: #{tpu_custom_call.1} parent=11 // pred_check
          %p271 = pneg %p81
        $region14: #{tpu_custom_call.1} parent=11 // pred_check_branch
          %273 = sbr.rel (%p271) target = $region16
        $region15: #{tpu_custom_call.1} parent=11 // pred_region
          _
        $region16: #{tpu_custom_call.1} parent=11 // pred_fallthru
          _
        // Predicated region
        $region17: #{tpu_custom_call.1} parent=11 // pred_check
          %p274 = pneg %p102
        $region18: #{tpu_custom_call.1} parent=11 // pred_check_branch
          %276 = sbr.rel (%p274) target = $region20
        $region19: #{tpu_custom_call.1} parent=11 // pred_region
          _
        $region20: #{tpu_custom_call.1} parent=11 // pred_fallthru
          _
        // Predicated region
        $region21: #{tpu_custom_call.1} parent=11 // pred_check
          %p277 = pneg %p123
        $region22: #{tpu_custom_call.1} parent=11 // pred_check_branch
          %279 = sbr.rel (%p277) target = $region24
        $region23: #{tpu_custom_call.1} parent=11 // pred_region
          _
        $region24: #{tpu_custom_call.1} parent=11 // pred_fallthru
          _
        // Predicated region
        $region25: #{tpu_custom_call.1} parent=11 // pred_check
          %p280 = pneg %p144
        $region26: #{tpu_custom_call.1} parent=11 // pred_check_branch
          %282 = sbr.rel (%p280) target = $region28
        $region27: #{tpu_custom_call.1} parent=11 // pred_region
          _
        $region28: #{tpu_custom_call.1} parent=11 // pred_fallthru
          _
        // Predicated region
        $region29: #{tpu_custom_call.1} parent=11 // pred_check
          %p283 = pneg %p165
        $region30: #{tpu_custom_call.1} parent=11 // pred_check_branch
          %285 = sbr.rel (%p283) target = $region32
        $region31: #{tpu_custom_call.1} parent=11 // pred_region
          %s287 = ssub.s32 256, 256
          %288 = vsyncadd [#allocation9], %s287
          %s289 = sshll.u32 [#allocation8], 4
          %s290 = int_to_ptr.vmem [resolvable:$true] %s289
          %295 = dma.hbm_to_vmem [thread:$0]  %s5, 256, %s290, [#allocation9], 64, 64, 4
        $region32: #{tpu_custom_call.1} parent=11 // pred_fallthru
          _
        // Predicated region
        $region33: #{tpu_custom_call.1} parent=11 // pred_check
          %p296 = pneg %p186
        $region34: #{tpu_custom_call.1} parent=11 // pred_check_branch
          %298 = sbr.rel (%p296) target = $region36
        $region35: #{tpu_custom_call.1} parent=11 // pred_region
          _
        $region36: #{tpu_custom_call.1} parent=11 // pred_fallthru
          _
        // Predicated region
        $region37: #{tpu_custom_call.1} parent=11 // pred_check
          %p299 = pneg %p207
        $region38: #{tpu_custom_call.1} parent=11 // pred_check_branch
          %301 = sbr.rel (%p299) target = $region40
        $region39: #{tpu_custom_call.1} parent=11 // pred_region
          %s303 = ssub.s32 256, 256
          %304 = vsyncadd [#allocation9], %s303
          %s305 = sshll.u32 [#allocation10], 4
          %s306 = int_to_ptr.vmem [resolvable:$true] %s305
          %311 = dma.hbm_to_vmem [thread:$0]  %s7, 256, %s306, [#allocation9], 64, 64, 4
        $region40: #{tpu_custom_call.1} parent=11 // pred_fallthru
          _
        // Predicated region
        $region41: #{tpu_custom_call.1} parent=11 // pred_check
          %p312 = pneg %p228
        $region42: #{tpu_custom_call.1} parent=11 // pred_check_branch
          %314 = sbr.rel (%p312) target = $region44
        $region43: #{tpu_custom_call.1} parent=11 // pred_region
          _
        $region44: #{tpu_custom_call.1} parent=11 // pred_fallthru
          _
      $region12: #{tpu_custom_call.1} parent=5 // pred_fallthru
        _
      %p315 = scmp.lt.s32.totalorder %s22, 4
      // Predicated region
      $region45: #{tpu_custom_call.1} parent=5 // pred_check
        %p316 = pneg %p315
      $region46: #{tpu_custom_call.1} parent=5 // pred_check_branch
        %318 = sbr.rel (%p316) target = $region48
      $region47: #{tpu_custom_call.1} parent=5 // pred_region
        // Predicated region
        $region49: #{tpu_custom_call.1} parent=47 // pred_check
          %p319 = pneg %p54
        $region50: #{tpu_custom_call.1} parent=47 // pred_check_branch
          %321 = sbr.rel (%p319) target = $region52
        $region51: #{tpu_custom_call.1} parent=47 // pred_region
          %s322 = sand.u32 %s44, 1
          %s323 = scalar_lea.sflag [#allocation6], %s322
          %s324 = sand.u32 %s44, 1
          %s325 = smul.addr %s324, 32
          %s326 = scalar_lea.vmem [#allocation5], %s325
          %s328 = ssub.s32 512, 512
          %329 = vsyncadd %s323, %s328
          %s330 = smul.addr %s29, 4
          %s331 = smul.addr %s330, 128
          %s332 = scalar_lea.hbm %s0, %s331
          %s333 = sshll.u32 %s326, 4
          %s334 = int_to_ptr.vmem [resolvable:$true] %s333
          %339 = dma.hbm_to_vmem [thread:$0]  %s332, 512, %s334, %s323, 128, 128, 8
        $region52: #{tpu_custom_call.1} parent=47 // pred_fallthru
          _
      $region48: #{tpu_custom_call.1} parent=5 // pred_fallthru
        _
      %p340 = scmp.le.s32.totalorder 1, %s22
      %p341 = scmp.lt.s32.totalorder %s22, 5
      %p342 = pnand %p340, %p341
      %p343 = pneg %p342
      // Predicated region
      $region53: #{tpu_custom_call.1} parent=5 // pred_check
        _
      $region54: #{tpu_custom_call.1} parent=5 // pred_check_branch
        %345 = sbr.rel (%p342) target = $region56
      $region55: #{tpu_custom_call.1} parent=5 // pred_region
        %s346 = ssub.s32 %s22, 1
        %s347 = sand.u32 %s47, 1
        %s348 = scalar_lea.sflag [#allocation6], %s347
        %s349 = sand.u32 %s47, 1
        %s350 = smul.addr %s349, 32
        %s351 = scalar_lea.vmem [#allocation5], %s350
        // Predicated region
        $region57: #{tpu_custom_call.1} parent=55 // pred_check
          %p352 = pneg %p60
        $region58: #{tpu_custom_call.1} parent=55 // pred_check_branch
          %354 = sbr.rel (%p352) target = $region60
        $region59: #{tpu_custom_call.1} parent=55 // pred_region
          %355 = dma.done %s348, 512
        $region60: #{tpu_custom_call.1} parent=55 // pred_fallthru
          _
        // Predicated region
        $region61: #{tpu_custom_call.1} parent=55 // pred_check
          %p356 = pneg %p165
        $region62: #{tpu_custom_call.1} parent=55 // pred_check_branch
          %358 = sbr.rel (%p356) target = $region64
        $region63: #{tpu_custom_call.1} parent=55 // pred_region
          %359 = dma.done [#allocation9], 256
        $region64: #{tpu_custom_call.1} parent=55 // pred_fallthru
          _
        // Predicated region
        $region65: #{tpu_custom_call.1} parent=55 // pred_check
          %p360 = pneg %p207
        $region66: #{tpu_custom_call.1} parent=55 // pred_check_branch
          %362 = sbr.rel (%p360) target = $region68
        $region67: #{tpu_custom_call.1} parent=55 // pred_region
          %363 = dma.done [#allocation9], 256
        $region68: #{tpu_custom_call.1} parent=55 // pred_fallthru
          _
        %s364 = sand.u32 %s47, 1
        %s365 = scalar_lea.sflag [#allocation6], %s364
        %s366 = sand.u32 %s47, 1
        %s367 = smul.addr %s366, 32
        %s368 = scalar_lea.vmem [#allocation5], %s367
        %p369 = pneg %p60
        %p370 = pneg %p57
        %p371 = pneg %p81
        %p372 = pneg %p78
        %p373 = pneg %p102
        %p374 = pneg %p99
        %p375 = pneg %p123
        %p376 = pneg %p120
        %p377 = pneg %p144
        %p378 = pneg %p141
        %p379 = pneg %p165
        %p380 = pneg %p162
        %p381 = pneg %p186
        %p382 = pneg %p183
        %p383 = pneg %p207
        %p384 = pneg %p204
        %p385 = pneg %p228
        %p386 = pneg %p225
        %p387 = pneg %p256
        %p388 = pneg %p253
        %s389 = sand.u32 %s243, 1
        %s390 = scalar_lea.sflag [#allocation7], %s389
        %s391 = sand.u32 %s243, 1
        %s392 = smul.addr %s391, 16
        %s393 = scalar_lea.vmem [#allocation11], %s392
        %s394 = smul.u32 2, %s32
        %s396 = smul.u32 %s32, 16
        %p397 = scmp.eq.s32.totalorder %s32, 0
        // Predicated region
        $region69: #{tpu_custom_call.1} parent=55 // pred_check
          %p398 = pneg %p397
        $region70: #{tpu_custom_call.1} parent=55 // pred_check_branch
          %400 = sbr.rel (%p398) target = $region72
        $region71: #{tpu_custom_call.1} parent=55 // pred_region
          %v401 = vld [vmem:[%s351] sm:$0xff]
          %v402 = vld [vmem:[%s351 + $0x8] sm:$0xff]
          %v403 = vld [vmem:[%s351 + $0x10] sm:$0xff]
          %v404 = vld [vmem:[%s351 + $0x18] sm:$0xff]
          %v405 = vld [vmem:[%s1] sm:$0x1]
          %v406 = vmul.f32 %v401, %v401
          %v407 = vmul.f32 %v402, %v402
          %v408 = vmul.f32 %v403, %v403
          %v409 = vmul.f32 %v404, %v404
          %vm410 = vcmask 261120
          %v411 = vsel %vm410, %v406, 0.0
          %412 = vadd.xlane.f32.xlu0 %v411
          %v413 = vpop.xlane.xlu0 %412
          %v414 = vsel %vm410, %v407, 0.0
          %415 = vadd.xlane.f32.xlu0 %v414
          %v416 = vpop.xlane.xlu0 %415
          %v417 = vsel %vm410, %v408, 0.0
          %418 = vadd.xlane.f32.xlu0 %v417
          %v419 = vpop.xlane.xlu0 %418
          %v420 = vsel %vm410, %v409, 0.0
          %421 = vadd.xlane.f32.xlu0 %v420
          %v422 = vpop.xlane.xlu0 %421
          %v423 = vrcp.pop 32.0
          %v424 = vmul.f32 %v413, %v423
          %v425 = vmul.f32 %v416, %v423
          %v426 = vmul.f32 %v419, %v423
          %v427 = vmul.f32 %v422, %v423
          %v428 = vadd.f32 %v424, 1e-05
          %v429 = vadd.f32 %v425, 1e-05
          %v430 = vadd.f32 %v426, 1e-05
          %v431 = vadd.f32 %v427, 1e-05
          %v432 = vrsqrt.pop %v428
          %v433 = vrsqrt.pop %v429
          %v434 = vrsqrt.pop %v430
          %v435 = vrsqrt.pop %v431
          %v436 = vmul.f32 %v401, %v432
          %v437 = vmul.f32 %v402, %v433
          %v438 = vmul.f32 %v403, %v434
          %v439 = vmul.f32 %v404, %v435
          %v441 = vlaneseq
          %v442 = vshrl.u32 %v441, 7
          %v443 = vsub.s32 0, %v442
          %v444 = vrot.slane %v405, %v443
          %v446 = vmul.f32 %v436, %v444
          %v447 = vmul.f32 %v437, %v444
          %v448 = vmul.f32 %v438, %v444
          %v449 = vmul.f32 %v439, %v444
          %v450 = vpack.c.bf16 %v447, %v446
          %v451 = vpack.c.bf16 %v449, %v448
          %v452 = vld [vmem:[%s2] sm:$0xf]
          %v453 = vld [vmem:[%s2 + $0x4] sm:$0xf]
          %v454 = vld [vmem:[%s2 + $0x8] sm:$0xf]
          %v455 = vld [vmem:[%s2 + $0xc] sm:$0xf]
          %v460 = vunpack.c.l.b16 %v452
          %v461 = vunpack.c.l.b16 %v453
          %v462 = vunpack.c.l.b16 %v454
          %v463 = vunpack.c.l.b16 %v455
          %v464 = vpack.c.b16 %v461, %v460
          %v465 = vpack.c.b16 %v463, %v462
          %v469 = vsel %vm410, %v450, 0
          %v472 = vsel %vm410, %v451, 0
          %474 = vmatprep.subr.bf16.mxu0 0
          %475 = vmatpush1.bf16.msra.mxu0 %v464
          %476 = vmatprep.subr.bf16.mxu0 0
          %477 = vmatpush1.bf16.msra.mxu0 %v465
          %478 = vmatprep.subr.bf16.mxu0 0
          %479 = vmatpush1.bf16.msra.mxu0 0
          %480 = vmatprep.subr.bf16.mxu0 0
          %481 = vmatpush1.bf16.msra.mxu0 0
          %482 = vmatprep.subr.bf16.mxu0 0
          %483 = vmatpush1.bf16.msra.mxu0 0
          %484 = vmatprep.subr.bf16.mxu0 0
          %485 = vmatpush1.bf16.msra.mxu0 0
          %486 = vmatprep.subr.bf16.mxu0 0
          %487 = vmatpush1.bf16.msra.mxu0 0
          %488 = vmatprep.subr.bf16.mxu0 0
          %489 = vmatpush1.bf16.msra.mxu0 0
          %490 = vmatprep.subr.bf16.mxu0 0
          %491 = vmatpush1.bf16.msra.mxu0 0
          %492 = vmatprep.subr.bf16.mxu0 0
          %493 = vmatpush1.bf16.msra.mxu0 0
          %494 = vmatprep.subr.bf16.mxu0 0
          %495 = vmatpush1.bf16.msra.mxu0 0
          %496 = vmatprep.subr.bf16.mxu0 0
          %497 = vmatpush1.bf16.msra.mxu0 0
          %498 = vmatprep.subr.bf16.mxu0 0
          %499 = vmatpush1.bf16.msra.mxu0 0
          %500 = vmatprep.subr.bf16.mxu0 0
          %501 = vmatpush1.bf16.msra.mxu0 0
          %502 = vmatprep.subr.bf16.mxu0 0
          %503 = vmatpush1.bf16.msra.mxu0 0
          %504 = vmatprep.subr.bf16.mxu0 0
          %505 = vmatpush1.bf16.msra.mxu0 0
          %506 = vmatprep.mubr.bf16.mxu0 0
          %507 = vmatmul.mubr.bf16.gmra.mrb[0].mxu0 %v469
          %v508 = vpop.f32.mrb[0].mxu0
          %v509 = vadd.f32 0.0, %v508
          %v510 = vpop.f32.mrb[0].mxu0
          %v511 = vpop.f32.mrb[0].mxu0
          %v512 = vadd.f32 0.0, %v511
          %v513 = vpop.f32.mrb[0].mxu0
          %514 = vmatprep.mubr.bf16.mxu0 0
          %515 = vmatmul.mubr.bf16.gmra.mrb[0].mxu0 %v472
          %v516 = vpop.f32.mrb[0].mxu0
          %v517 = vadd.f32 0.0, %v516
          %v518 = vpop.f32.mrb[0].mxu0
          %v519 = vpop.f32.mrb[0].mxu0
          %v520 = vadd.f32 0.0, %v519
          %v521 = vpop.f32.mrb[0].mxu0
          %522 = vdwg.mxu0
          %v523 = vmul.f32 %v509, 0.35355338
          %v524 = vmul.f32 %v512, 0.35355338
          %v525 = vmul.f32 %v517, 0.35355338
          %v526 = vmul.f32 %v520, 0.35355338
          %v527 = vld [vmem:[%s3] sm:$0xf]
          %v528 = vld [vmem:[%s3 + $0x4] sm:$0xf]
          %v529 = vld [vmem:[%s3 + $0x8] sm:$0xf]
          %v530 = vld [vmem:[%s3 + $0xc] sm:$0xf]
          %v535 = vunpack.c.l.b16 %v527
          %v536 = vunpack.c.l.b16 %v528
          %v537 = vunpack.c.l.b16 %v529
          %v538 = vunpack.c.l.b16 %v530
          %v539 = vpack.c.b16 %v536, %v535
          %v540 = vpack.c.b16 %v538, %v537
          %543 = vmatprep.subr.bf16.mxu0 0
          %544 = vmatpush1.bf16.msra.mxu0 %v539
          %545 = vmatprep.subr.bf16.mxu0 0
          %546 = vmatpush1.bf16.msra.mxu0 %v540
          %547 = vmatprep.subr.bf16.mxu0 0
          %548 = vmatpush1.bf16.msra.mxu0 0
          %549 = vmatprep.subr.bf16.mxu0 0
          %550 = vmatpush1.bf16.msra.mxu0 0
          %551 = vmatprep.subr.bf16.mxu0 0
          %552 = vmatpush1.bf16.msra.mxu0 0
          %553 = vmatprep.subr.bf16.mxu0 0
          %554 = vmatpush1.bf16.msra.mxu0 0
          %555 = vmatprep.subr.bf16.mxu0 0
          %556 = vmatpush1.bf16.msra.mxu0 0
          %557 = vmatprep.subr.bf16.mxu0 0
          %558 = vmatpush1.bf16.msra.mxu0 0
          %559 = vmatprep.subr.bf16.mxu0 0
          %560 = vmatpush1.bf16.msra.mxu0 0
          %561 = vmatprep.subr.bf16.mxu0 0
          %562 = vmatpush1.bf16.msra.mxu0 0
          %563 = vmatprep.subr.bf16.mxu0 0
          %564 = vmatpush1.bf16.msra.mxu0 0
          %565 = vmatprep.subr.bf16.mxu0 0
          %566 = vmatpush1.bf16.msra.mxu0 0
          %567 = vmatprep.subr.bf16.mxu0 0
          %568 = vmatpush1.bf16.msra.mxu0 0
          %569 = vmatprep.subr.bf16.mxu0 0
          %570 = vmatpush1.bf16.msra.mxu0 0
          %571 = vmatprep.subr.bf16.mxu0 0
          %572 = vmatpush1.bf16.msra.mxu0 0
          %573 = vmatprep.subr.bf16.mxu0 0
          %574 = vmatpush1.bf16.msra.mxu0 0
          %575 = vmatprep.mubr.bf16.mxu0 0
          %576 = vmatmul.mubr.bf16.gmra.mrb[0].mxu0 %v469
          %v577 = vpop.f32.mrb[0].mxu0
          %v578 = vadd.f32 0.0, %v577
          %v579 = vpop.f32.mrb[0].mxu0
          %v580 = vpop.f32.mrb[0].mxu0
          %v581 = vadd.f32 0.0, %v580
          %v582 = vpop.f32.mrb[0].mxu0
          %583 = vmatprep.mubr.bf16.mxu0 0
          %584 = vmatmul.mubr.bf16.gmra.mrb[0].mxu0 %v472
          %v585 = vpop.f32.mrb[0].mxu0
          %v586 = vadd.f32 0.0, %v585
          %v587 = vpop.f32.mrb[0].mxu0
          %v588 = vpop.f32.mrb[0].mxu0
          %v589 = vadd.f32 0.0, %v588
          %v590 = vpop.f32.mrb[0].mxu0
          %591 = vdwg.mxu0
          %v592 = vld [vmem:[%s4] sm:$0xf]
          %v593 = vld [vmem:[%s4 + $0x4] sm:$0xf]
          %v594 = vld [vmem:[%s4 + $0x8] sm:$0xf]
          %v595 = vld [vmem:[%s4 + $0xc] sm:$0xf]
          %v600 = vunpack.c.l.b16 %v592
          %v601 = vunpack.c.l.b16 %v593
          %v602 = vunpack.c.l.b16 %v594
          %v603 = vunpack.c.l.b16 %v595
          %v604 = vpack.c.b16 %v601, %v600
          %v605 = vpack.c.b16 %v603, %v602
          %608 = vmatprep.subr.bf16.mxu0 0
          %609 = vmatpush1.bf16.msra.mxu0 %v604
          %610 = vmatprep.subr.bf16.mxu0 0
          %611 = vmatpush1.bf16.msra.mxu0 %v605
          %612 = vmatprep.subr.bf16.mxu0 0
          %613 = vmatpush1.bf16.msra.mxu0 0
          %614 = vmatprep.subr.bf16.mxu0 0
          %615 = vmatpush1.bf16.msra.mxu0 0
          %616 = vmatprep.subr.bf16.mxu0 0
          %617 = vmatpush1.bf16.msra.mxu0 0
          %618 = vmatprep.subr.bf16.mxu0 0
          %619 = vmatpush1.bf16.msra.mxu0 0
          %620 = vmatprep.subr.bf16.mxu0 0
          %621 = vmatpush1.bf16.msra.mxu0 0
          %622 = vmatprep.subr.bf16.mxu0 0
          %623 = vmatpush1.bf16.msra.mxu0 0
          %624 = vmatprep.subr.bf16.mxu0 0
          %625 = vmatpush1.bf16.msra.mxu0 0
          %626 = vmatprep.subr.bf16.mxu0 0
          %627 = vmatpush1.bf16.msra.mxu0 0
          %628 = vmatprep.subr.bf16.mxu0 0
          %629 = vmatpush1.bf16.msra.mxu0 0
          %630 = vmatprep.subr.bf16.mxu0 0
          %631 = vmatpush1.bf16.msra.mxu0 0
          %632 = vmatprep.subr.bf16.mxu0 0
          %633 = vmatpush1.bf16.msra.mxu0 0
          %634 = vmatprep.subr.bf16.mxu0 0
          %635 = vmatpush1.bf16.msra.mxu0 0
          %636 = vmatprep.subr.bf16.mxu0 0
          %637 = vmatpush1.bf16.msra.mxu0 0
          %638 = vmatprep.subr.bf16.mxu0 0
          %639 = vmatpush1.bf16.msra.mxu0 0
          %640 = vmatprep.mubr.bf16.mxu0 0
          %641 = vmatmul.mubr.bf16.gmra.mrb[0].mxu0 %v469
          %v642 = vpop.f32.mrb[0].mxu0
          %v643 = vadd.f32 0.0, %v642
          %v644 = vpop.f32.mrb[0].mxu0
          %v645 = vpop.f32.mrb[0].mxu0
          %v646 = vadd.f32 0.0, %v645
          %v647 = vpop.f32.mrb[0].mxu0
          %648 = vmatprep.mubr.bf16.mxu0 0
          %649 = vmatmul.mubr.bf16.gmra.mrb[0].mxu0 %v472
          %v650 = vpop.f32.mrb[0].mxu0
          %v651 = vadd.f32 0.0, %v650
          %v652 = vpop.f32.mrb[0].mxu0
          %v653 = vpop.f32.mrb[0].mxu0
          %v654 = vadd.f32 0.0, %v653
          %v655 = vpop.f32.mrb[0].mxu0
          %656 = vdwg.mxu0
          %v657 = vpack.c.bf16 %v524, %v523
          %v658 = vpack.c.bf16 %v526, %v525
          %vm659 = vcmask 64512
          %660 = vst.msk [vmem:[#allocation2] sm:$0xff] %vm659, %v657
          %661 = vst.msk [vmem:[#allocation2 + $0x8] sm:$0xff] %vm659, %v658
          %v662 = vpack.c.bf16 %v581, %v578
          %v663 = vpack.c.bf16 %v589, %v586
          %664 = vst.msk [vmem:[#allocation3] sm:$0xff] %vm659, %v662
          %665 = vst.msk [vmem:[#allocation3 + $0x8] sm:$0xff] %vm659, %v663
          %v666 = vpack.c.bf16 %v646, %v643
          %v667 = vpack.c.bf16 %v654, %v651
          %668 = vst.msk [vmem:[#allocation4] sm:$0xff] %vm659, %v666
          %669 = vst.msk [vmem:[#allocation4 + $0x8] sm:$0xff] %vm659, %v667
          %672 = vrot.lane.b32.xlu0 %v657, 120
          %v673 = vpop.permute.xlu0 %672
          %674 = vrot.lane.b32.xlu0 %v658, 120
          %v675 = vpop.permute.xlu0 %674
          %s678 = scalar_lea.vmem [#allocation2], 16
          %679 = vst.msk [vmem:[%s678] sm:$0xff] %vm659, %v673
          %680 = vst.msk [vmem:[%s678 + $0x8] sm:$0xff] %vm659, %v675
          %683 = vrot.lane.b32.xlu0 %v662, 120
          %v684 = vpop.permute.xlu0 %683
          %685 = vrot.lane.b32.xlu0 %v663, 120
          %v686 = vpop.permute.xlu0 %685
          %s689 = scalar_lea.vmem [#allocation3], 16
          %690 = vst.msk [vmem:[%s689] sm:$0xff] %vm659, %v684
          %691 = vst.msk [vmem:[%s689 + $0x8] sm:$0xff] %vm659, %v686
          %694 = vrot.lane.b32.xlu0 %v666, 120
          %v695 = vpop.permute.xlu0 %694
          %696 = vrot.lane.b32.xlu0 %v667, 120
          %v697 = vpop.permute.xlu0 %696
          %s700 = scalar_lea.vmem [#allocation4], 16
          %701 = vst.msk [vmem:[%s700] sm:$0xff] %vm659, %v695
          %702 = vst.msk [vmem:[%s700 + $0x8] sm:$0xff] %vm659, %v697
          %703 = vrot.lane.b32.xlu0 %v657, 112
          %v704 = vpop.permute.xlu0 %703
          %705 = vrot.lane.b32.xlu0 %v658, 112
          %v706 = vpop.permute.xlu0 %705
          %s709 = scalar_lea.vmem [#allocation2], 32
          %710 = vst.msk [vmem:[%s709] sm:$0xff] %vm659, %v704
          %711 = vst.msk [vmem:[%s709 + $0x8] sm:$0xff] %vm659, %v706
          %712 = vrot.lane.b32.xlu0 %v662, 112
          %v713 = vpop.permute.xlu0 %712
          %714 = vrot.lane.b32.xlu0 %v663, 112
          %v715 = vpop.permute.xlu0 %714
          %s718 = scalar_lea.vmem [#allocation3], 32
          %719 = vst.msk [vmem:[%s718] sm:$0xff] %vm659, %v713
          %720 = vst.msk [vmem:[%s718 + $0x8] sm:$0xff] %vm659, %v715
          %721 = vrot.lane.b32.xlu0 %v666, 112
          %v722 = vpop.permute.xlu0 %721
          %723 = vrot.lane.b32.xlu0 %v667, 112
          %v724 = vpop.permute.xlu0 %723
          %s727 = scalar_lea.vmem [#allocation4], 32
          %728 = vst.msk [vmem:[%s727] sm:$0xff] %vm659, %v722
          %729 = vst.msk [vmem:[%s727 + $0x8] sm:$0xff] %vm659, %v724
          %730 = vrot.lane.b32.xlu0 %v657, 104
          %v731 = vpop.permute.xlu0 %730
          %732 = vrot.lane.b32.xlu0 %v658, 104
          %v733 = vpop.permute.xlu0 %732
          %s736 = scalar_lea.vmem [#allocation2], 48
          %737 = vst.msk [vmem:[%s736] sm:$0xff] %vm659, %v731
          %738 = vst.msk [vmem:[%s736 + $0x8] sm:$0xff] %vm659, %v733
          %739 = vrot.lane.b32.xlu0 %v662, 104
          %v740 = vpop.permute.xlu0 %739
          %741 = vrot.lane.b32.xlu0 %v663, 104
          %v742 = vpop.permute.xlu0 %741
          %s745 = scalar_lea.vmem [#allocation3], 48
          %746 = vst.msk [vmem:[%s745] sm:$0xff] %vm659, %v740
          %747 = vst.msk [vmem:[%s745 + $0x8] sm:$0xff] %vm659, %v742
          %748 = vrot.lane.b32.xlu0 %v666, 104
          %v749 = vpop.permute.xlu0 %748
          %750 = vrot.lane.b32.xlu0 %v667, 104
          %v751 = vpop.permute.xlu0 %750
          %s754 = scalar_lea.vmem [#allocation4], 48
          %755 = vst.msk [vmem:[%s754] sm:$0xff] %vm659, %v749
          %756 = vst.msk [vmem:[%s754 + $0x8] sm:$0xff] %vm659, %v751
        $region72: #{tpu_custom_call.1} parent=55 // pred_fallthru
          _
        %s757 = sshra.s32 %s396, 4
        %s758 = sand.u32 %s396, 15
        %s759 = smul.addr %s757, 8
        %s760 = scalar_lea.vmem [#allocation2], %s759
        %v761 = vld [vmem:[%s760] sm:$0xff]
        %v762 = vld [vmem:[%s760 + $0x10] sm:$0xff]
        %v763 = vld [vmem:[%s760 + $0x20] sm:$0xff]
        %v764 = vld [vmem:[%s760 + $0x30] sm:$0xff]
        %s765 = smul.addr %s757, 8
        %s766 = scalar_lea.vmem [#allocation3], %s765
        %v767 = vld [vmem:[%s766] sm:$0xff]
        %v768 = vld [vmem:[%s766 + $0x10] sm:$0xff]
        %v769 = vld [vmem:[%s766 + $0x20] sm:$0xff]
        %v770 = vld [vmem:[%s766 + $0x30] sm:$0xff]
        %s771 = smul.addr %s757, 8
        %s772 = scalar_lea.vmem [#allocation4], %s771
        %v773 = vld [vmem:[%s772] sm:$0xff]
        %v774 = vld [vmem:[%s772 + $0x10] sm:$0xff]
        %v775 = vld [vmem:[%s772 + $0x20] sm:$0xff]
        %v776 = vld [vmem:[%s772 + $0x30] sm:$0xff]
        %v777 = vlaneseq
        %v778 = vshrl.u32 %v777, 7
        %v779 = vadd.s32 %v778, 8
        %v780 = vlaneseq
        %v781 = vand.u32 %v780, 127
        %vm782 = vcmp.gt.s32.totalorder %v781, %v778
        %vm783 = vcmp.gt.s32.totalorder %v781, %v779
        %v784 = vsel %vm782, -1e+30, 0.0
        %v785 = vsel %vm783, -1e+30, 0.0
        %vm786 = vcmask 64512
        %v788 = vsel %vm786, %v761, 0
        %v791 = vsel %vm786, %v767, 0
        %793 = vmatprep.subr.bf16.mxu0 0
        %794 = vmatpush1.bf16.xpose.msra.mxu0 %v791
        %795 = vmatprep.subr.bf16.mxu0 0
        %796 = vmatpush1.bf16.xpose.msra.mxu0 0
        %797 = vmatprep.subr.bf16.mxu0 0
        %798 = vmatpush1.bf16.xpose.msra.mxu0 0
        %799 = vmatprep.subr.bf16.mxu0 0
        %800 = vmatpush1.bf16.xpose.msra.mxu0 0
        %801 = vmatprep.subr.bf16.mxu0 0
        %802 = vmatpush1.bf16.xpose.msra.mxu0 0
        %803 = vmatprep.subr.bf16.mxu0 0
        %804 = vmatpush1.bf16.xpose.msra.mxu0 0
        %805 = vmatprep.subr.bf16.mxu0 0
        %806 = vmatpush1.bf16.xpose.msra.mxu0 0
        %807 = vmatprep.subr.bf16.mxu0 0
        %808 = vmatpush1.bf16.xpose.msra.mxu0 0
        %809 = vmatprep.subr.bf16.mxu0 0
        %810 = vmatpush1.bf16.xpose.msra.mxu0 0
        %811 = vmatprep.subr.bf16.mxu0 0
        %812 = vmatpush1.bf16.xpose.msra.mxu0 0
        %813 = vmatprep.subr.bf16.mxu0 0
        %814 = vmatpush1.bf16.xpose.msra.mxu0 0
        %815 = vmatprep.subr.bf16.mxu0 0
        %816 = vmatpush1.bf16.xpose.msra.mxu0 0
        %817 = vmatprep.subr.bf16.mxu0 0
        %818 = vmatpush1.bf16.xpose.msra.mxu0 0
        %819 = vmatprep.subr.bf16.mxu0 0
        %820 = vmatpush1.bf16.xpose.msra.mxu0 0
        %821 = vmatprep.subr.bf16.mxu0 0
        %822 = vmatpush1.bf16.xpose.msra.mxu0 0
        %823 = vmatprep.subr.bf16.mxu0 0
        %824 = vmatpush1.bf16.xpose.msra.mxu0 0
        %825 = vmatprep.mubr.bf16.mxu0 0
        %826 = vmatmul.mubr.bf16.gmra.mrb[0].mxu0 %v788
        %v827 = vpop.f32.mrb[0].mxu0
        %v828 = vadd.f32 %v784, %v827
        %v829 = vpop.f32.mrb[0].mxu0
        %v830 = vpop.f32.mrb[0].mxu0
        %v831 = vadd.f32 %v785, %v830
        %v832 = vpop.f32.mrb[0].mxu0
        %833 = vdwg.mxu0
        %v835 = vsel %vm786, %v762, 0
        %v838 = vsel %vm786, %v768, 0
        %840 = vmatprep.subr.bf16.mxu0 0
        %841 = vmatpush1.bf16.xpose.msra.mxu0 %v838
        %842 = vmatprep.subr.bf16.mxu0 0
        %843 = vmatpush1.bf16.xpose.msra.mxu0 0
        %844 = vmatprep.subr.bf16.mxu0 0
        %845 = vmatpush1.bf16.xpose.msra.mxu0 0
        %846 = vmatprep.subr.bf16.mxu0 0
        %847 = vmatpush1.bf16.xpose.msra.mxu0 0
        %848 = vmatprep.subr.bf16.mxu0 0
        %849 = vmatpush1.bf16.xpose.msra.mxu0 0
        %850 = vmatprep.subr.bf16.mxu0 0
        %851 = vmatpush1.bf16.xpose.msra.mxu0 0
        %852 = vmatprep.subr.bf16.mxu0 0
        %853 = vmatpush1.bf16.xpose.msra.mxu0 0
        %854 = vmatprep.subr.bf16.mxu0 0
        %855 = vmatpush1.bf16.xpose.msra.mxu0 0
        %856 = vmatprep.subr.bf16.mxu0 0
        %857 = vmatpush1.bf16.xpose.msra.mxu0 0
        %858 = vmatprep.subr.bf16.mxu0 0
        %859 = vmatpush1.bf16.xpose.msra.mxu0 0
        %860 = vmatprep.subr.bf16.mxu0 0
        %861 = vmatpush1.bf16.xpose.msra.mxu0 0
        %862 = vmatprep.subr.bf16.mxu0 0
        %863 = vmatpush1.bf16.xpose.msra.mxu0 0
        %864 = vmatprep.subr.bf16.mxu0 0
        %865 = vmatpush1.bf16.xpose.msra.mxu0 0
        %866 = vmatprep.subr.bf16.mxu0 0
        %867 = vmatpush1.bf16.xpose.msra.mxu0 0
        %868 = vmatprep.subr.bf16.mxu0 0
        %869 = vmatpush1.bf16.xpose.msra.mxu0 0
        %870 = vmatprep.subr.bf16.mxu0 0
        %871 = vmatpush1.bf16.xpose.msra.mxu0 0
        %872 = vmatprep.mubr.bf16.mxu0 0
        %873 = vmatmul.mubr.bf16.gmra.mrb[0].mxu0 %v835
        %v874 = vpop.f32.mrb[0].mxu0
        %v875 = vadd.f32 %v784, %v874
        %v876 = vpop.f32.mrb[0].mxu0
        %v877 = vpop.f32.mrb[0].mxu0
        %v878 = vadd.f32 %v785, %v877
        %v879 = vpop.f32.mrb[0].mxu0
        %880 = vdwg.mxu0
        %v882 = vsel %vm786, %v763, 0
        %v885 = vsel %vm786, %v769, 0
        %887 = vmatprep.subr.bf16.mxu0 0
        %888 = vmatpush1.bf16.xpose.msra.mxu0 %v885
        %889 = vmatprep.subr.bf16.mxu0 0
        %890 = vmatpush1.bf16.xpose.msra.mxu0 0
        %891 = vmatprep.subr.bf16.mxu0 0
        %892 = vmatpush1.bf16.xpose.msra.mxu0 0
        %893 = vmatprep.subr.bf16.mxu0 0
        %894 = vmatpush1.bf16.xpose.msra.mxu0 0
        %895 = vmatprep.subr.bf16.mxu0 0
        %896 = vmatpush1.bf16.xpose.msra.mxu0 0
        %897 = vmatprep.subr.bf16.mxu0 0
        %898 = vmatpush1.bf16.xpose.msra.mxu0 0
        %899 = vmatprep.subr.bf16.mxu0 0
        %900 = vmatpush1.bf16.xpose.msra.mxu0 0
        %901 = vmatprep.subr.bf16.mxu0 0
        %902 = vmatpush1.bf16.xpose.msra.mxu0 0
        %903 = vmatprep.subr.bf16.mxu0 0
        %904 = vmatpush1.bf16.xpose.msra.mxu0 0
        %905 = vmatprep.subr.bf16.mxu0 0
        %906 = vmatpush1.bf16.xpose.msra.mxu0 0
        %907 = vmatprep.subr.bf16.mxu0 0
        %908 = vmatpush1.bf16.xpose.msra.mxu0 0
        %909 = vmatprep.subr.bf16.mxu0 0
        %910 = vmatpush1.bf16.xpose.msra.mxu0 0
        %911 = vmatprep.subr.bf16.mxu0 0
        %912 = vmatpush1.bf16.xpose.msra.mxu0 0
        %913 = vmatprep.subr.bf16.mxu0 0
        %914 = vmatpush1.bf16.xpose.msra.mxu0 0
        %915 = vmatprep.subr.bf16.mxu0 0
        %916 = vmatpush1.bf16.xpose.msra.mxu0 0
        %917 = vmatprep.subr.bf16.mxu0 0
        %918 = vmatpush1.bf16.xpose.msra.mxu0 0
        %919 = vmatprep.mubr.bf16.mxu0 0
        %920 = vmatmul.mubr.bf16.gmra.mrb[0].mxu0 %v882
        %v921 = vpop.f32.mrb[0].mxu0
        %v922 = vadd.f32 %v784, %v921
        %v923 = vpop.f32.mrb[0].mxu0
        %v924 = vpop.f32.mrb[0].mxu0
        %v925 = vadd.f32 %v785, %v924
        %v926 = vpop.f32.mrb[0].mxu0
        %927 = vdwg.mxu0
        %v929 = vsel %vm786, %v764, 0
        %v932 = vsel %vm786, %v770, 0
        %934 = vmatprep.subr.bf16.mxu0 0
        %935 = vmatpush1.bf16.xpose.msra.mxu0 %v932
        %936 = vmatprep.subr.bf16.mxu0 0
        %937 = vmatpush1.bf16.xpose.msra.mxu0 0
        %938 = vmatprep.subr.bf16.mxu0 0
        %939 = vmatpush1.bf16.xpose.msra.mxu0 0
        %940 = vmatprep.subr.bf16.mxu0 0
        %941 = vmatpush1.bf16.xpose.msra.mxu0 0
        %942 = vmatprep.subr.bf16.mxu0 0
        %943 = vmatpush1.bf16.xpose.msra.mxu0 0
        %944 = vmatprep.subr.bf16.mxu0 0
        %945 = vmatpush1.bf16.xpose.msra.mxu0 0
        %946 = vmatprep.subr.bf16.mxu0 0
        %947 = vmatpush1.bf16.xpose.msra.mxu0 0
        %948 = vmatprep.subr.bf16.mxu0 0
        %949 = vmatpush1.bf16.xpose.msra.mxu0 0
        %950 = vmatprep.subr.bf16.mxu0 0
        %951 = vmatpush1.bf16.xpose.msra.mxu0 0
        %952 = vmatprep.subr.bf16.mxu0 0
        %953 = vmatpush1.bf16.xpose.msra.mxu0 0
        %954 = vmatprep.subr.bf16.mxu0 0
        %955 = vmatpush1.bf16.xpose.msra.mxu0 0
        %956 = vmatprep.subr.bf16.mxu0 0
        %957 = vmatpush1.bf16.xpose.msra.mxu0 0
        %958 = vmatprep.subr.bf16.mxu0 0
        %959 = vmatpush1.bf16.xpose.msra.mxu0 0
        %960 = vmatprep.subr.bf16.mxu0 0
        %961 = vmatpush1.bf16.xpose.msra.mxu0 0
        %962 = vmatprep.subr.bf16.mxu0 0
        %963 = vmatpush1.bf16.xpose.msra.mxu0 0
        %964 = vmatprep.subr.bf16.mxu0 0
        %965 = vmatpush1.bf16.xpose.msra.mxu0 0
        %966 = vmatprep.mubr.bf16.mxu0 0
        %967 = vmatmul.mubr.bf16.gmra.mrb[0].mxu0 %v929
        %v968 = vpop.f32.mrb[0].mxu0
        %v969 = vadd.f32 %v784, %v968
        %v970 = vpop.f32.mrb[0].mxu0
        %v971 = vpop.f32.mrb[0].mxu0
        %v972 = vadd.f32 %v785, %v971
        %v973 = vpop.f32.mrb[0].mxu0
        %974 = vdwg.mxu0
        %vm975 = vcmask 130048
        %v976 = vsel %vm975, %v828, -inf
        %977 = vmax.xlane.f32.xlu0 %v976
        %v978 = vpop.xlane.xlu0 %977
        %v979 = vsel %vm975, %v831, -inf
        %980 = vmax.xlane.f32.xlu0 %v979
        %v981 = vpop.xlane.xlu0 %980
        %v982 = vsel %vm975, %v875, -inf
        %983 = vmax.xlane.f32.xlu0 %v982
        %v984 = vpop.xlane.xlu0 %983
        %v985 = vsel %vm975, %v878, -inf
        %986 = vmax.xlane.f32.xlu0 %v985
        %v987 = vpop.xlane.xlu0 %986
        %v988 = vsel %vm975, %v922, -inf
        %989 = vmax.xlane.f32.xlu0 %v988
        %v990 = vpop.xlane.xlu0 %989
        %v991 = vsel %vm975, %v925, -inf
        %992 = vmax.xlane.f32.xlu0 %v991
        %v993 = vpop.xlane.xlu0 %992
        %v994 = vsel %vm975, %v969, -inf
        %995 = vmax.xlane.f32.xlu0 %v994
        %v996 = vpop.xlane.xlu0 %995
        %v997 = vsel %vm975, %v972, -inf
        %998 = vmax.xlane.f32.xlu0 %v997
        %v999 = vpop.xlane.xlu0 %998
        %v1000 = vsub.f32 %v828, %v978
        %v1001 = vsub.f32 %v831, %v981
        %v1002 = vsub.f32 %v875, %v984
        %v1003 = vsub.f32 %v878, %v987
        %v1004 = vsub.f32 %v922, %v990
        %v1005 = vsub.f32 %v925, %v993
        %v1006 = vsub.f32 %v969, %v996
        %v1007 = vsub.f32 %v972, %v999
        %v1008 = vmul.f32 %v1000, 1.442695
        %v1009 = vpow.pop %v1008
        %v1010 = vmul.f32 %v1001, 1.442695
        %v1011 = vpow.pop %v1010
        %v1012 = vmul.f32 %v1002, 1.442695
        %v1013 = vpow.pop %v1012
        %v1014 = vmul.f32 %v1003, 1.442695
        %v1015 = vpow.pop %v1014
        %v1016 = vmul.f32 %v1004, 1.442695
        %v1017 = vpow.pop %v1016
        %v1018 = vmul.f32 %v1005, 1.442695
        %v1019 = vpow.pop %v1018
        %v1020 = vmul.f32 %v1006, 1.442695
        %v1021 = vpow.pop %v1020
        %v1022 = vmul.f32 %v1007, 1.442695
        %v1023 = vpow.pop %v1022
        %v1024 = vsel %vm975, %v1009, 0.0
        %1025 = vadd.xlane.f32.xlu0 %v1024
        %v1026 = vpop.xlane.xlu0 %1025
        %v1027 = vsel %vm975, %v1011, 0.0
        %1028 = vadd.xlane.f32.xlu0 %v1027
        %v1029 = vpop.xlane.xlu0 %1028
        %v1030 = vsel %vm975, %v1013, 0.0
        %1031 = vadd.xlane.f32.xlu0 %v1030
        %v1032 = vpop.xlane.xlu0 %1031
        %v1033 = vsel %vm975, %v1015, 0.0
        %1034 = vadd.xlane.f32.xlu0 %v1033
        %v1035 = vpop.xlane.xlu0 %1034
        %v1036 = vsel %vm975, %v1017, 0.0
        %1037 = vadd.xlane.f32.xlu0 %v1036
        %v1038 = vpop.xlane.xlu0 %1037
        %v1039 = vsel %vm975, %v1019, 0.0
        %1040 = vadd.xlane.f32.xlu0 %v1039
        %v1041 = vpop.xlane.xlu0 %1040
        %v1042 = vsel %vm975, %v1021, 0.0
        %1043 = vadd.xlane.f32.xlu0 %v1042
        %v1044 = vpop.xlane.xlu0 %1043
        %v1045 = vsel %vm975, %v1023, 0.0
        %1046 = vadd.xlane.f32.xlu0 %v1045
        %v1047 = vpop.xlane.xlu0 %1046
        %v1048 = vpack.c.bf16 %v1011, %v1009
        %v1049 = vpack.c.bf16 %v1015, %v1013
        %v1050 = vpack.c.bf16 %v1019, %v1017
        %v1051 = vpack.c.bf16 %v1023, %v1021
        %v1053 = vsel %vm975, %v1048, 0
        %1055 = vmatprep.subr.bf16.mxu0 0
        %1056 = vmatpush1.bf16.msra.mxu0 %v773
        %1057 = vmatprep.subr.bf16.mxu0 0
        %1058 = vmatpush1.bf16.msra.mxu0 0
        %1059 = vmatprep.subr.bf16.mxu0 0
        %1060 = vmatpush1.bf16.msra.mxu0 0
        %1061 = vmatprep.subr.bf16.mxu0 0
        %1062 = vmatpush1.bf16.msra.mxu0 0
        %1063 = vmatprep.subr.bf16.mxu0 0
        %1064 = vmatpush1.bf16.msra.mxu0 0
        %1065 = vmatprep.subr.bf16.mxu0 0
        %1066 = vmatpush1.bf16.msra.mxu0 0
        %1067 = vmatprep.subr.bf16.mxu0 0
        %1068 = vmatpush1.bf16.msra.mxu0 0
        %1069 = vmatprep.subr.bf16.mxu0 0
        %1070 = vmatpush1.bf16.msra.mxu0 0
        %1071 = vmatprep.subr.bf16.mxu0 0
        %1072 = vmatpush1.bf16.msra.mxu0 0
        %1073 = vmatprep.subr.bf16.mxu0 0
        %1074 = vmatpush1.bf16.msra.mxu0 0
        %1075 = vmatprep.subr.bf16.mxu0 0
        %1076 = vmatpush1.bf16.msra.mxu0 0
        %1077 = vmatprep.subr.bf16.mxu0 0
        %1078 = vmatpush1.bf16.msra.mxu0 0
        %1079 = vmatprep.subr.bf16.mxu0 0
        %1080 = vmatpush1.bf16.msra.mxu0 0
        %1081 = vmatprep.subr.bf16.mxu0 0
        %1082 = vmatpush1.bf16.msra.mxu0 0
        %1083 = vmatprep.subr.bf16.mxu0 0
        %1084 = vmatpush1.bf16.msra.mxu0 0
        %1085 = vmatprep.subr.bf16.mxu0 0
        %1086 = vmatpush1.bf16.msra.mxu0 0
        %1087 = vmatprep.mubr.bf16.mxu0 0
        %1088 = vmatmul.mubr.bf16.gmra.mrb[0].mxu0 %v1053
        %v1089 = vpop.f32.mrb[0].mxu0
        %v1090 = vadd.f32 0.0, %v1089
        %v1091 = vpop.f32.mrb[0].mxu0
        %v1092 = vpop.f32.mrb[0].mxu0
        %v1093 = vadd.f32 0.0, %v1092
        %v1094 = vpop.f32.mrb[0].mxu0
        %1095 = vdwg.mxu0
        %v1097 = vsel %vm975, %v1049, 0
        %1099 = vmatprep.subr.bf16.mxu0 0
        %1100 = vmatpush1.bf16.msra.mxu0 %v774
        %1101 = vmatprep.subr.bf16.mxu0 0
        %1102 = vmatpush1.bf16.msra.mxu0 0
        %1103 = vmatprep.subr.bf16.mxu0 0
        %1104 = vmatpush1.bf16.msra.mxu0 0
        %1105 = vmatprep.subr.bf16.mxu0 0
        %1106 = vmatpush1.bf16.msra.mxu0 0
        %1107 = vmatprep.subr.bf16.mxu0 0
        %1108 = vmatpush1.bf16.msra.mxu0 0
        %1109 = vmatprep.subr.bf16.mxu0 0
        %1110 = vmatpush1.bf16.msra.mxu0 0
        %1111 = vmatprep.subr.bf16.mxu0 0
        %1112 = vmatpush1.bf16.msra.mxu0 0
        %1113 = vmatprep.subr.bf16.mxu0 0
        %1114 = vmatpush1.bf16.msra.mxu0 0
        %1115 = vmatprep.subr.bf16.mxu0 0
        %1116 = vmatpush1.bf16.msra.mxu0 0
        %1117 = vmatprep.subr.bf16.mxu0 0
        %1118 = vmatpush1.bf16.msra.mxu0 0
        %1119 = vmatprep.subr.bf16.mxu0 0
        %1120 = vmatpush1.bf16.msra.mxu0 0
        %1121 = vmatprep.subr.bf16.mxu0 0
        %1122 = vmatpush1.bf16.msra.mxu0 0
        %1123 = vmatprep.subr.bf16.mxu0 0
        %1124 = vmatpush1.bf16.msra.mxu0 0
        %1125 = vmatprep.subr.bf16.mxu0 0
        %1126 = vmatpush1.bf16.msra.mxu0 0
        %1127 = vmatprep.subr.bf16.mxu0 0
        %1128 = vmatpush1.bf16.msra.mxu0 0
        %1129 = vmatprep.subr.bf16.mxu0 0
        %1130 = vmatpush1.bf16.msra.mxu0 0
        %1131 = vmatprep.mubr.bf16.mxu0 0
        %1132 = vmatmul.mubr.bf16.gmra.mrb[0].mxu0 %v1097
        %v1133 = vpop.f32.mrb[0].mxu0
        %v1134 = vadd.f32 0.0, %v1133
        %v1135 = vpop.f32.mrb[0].mxu0
        %v1136 = vpop.f32.mrb[0].mxu0
        %v1137 = vadd.f32 0.0, %v1136
        %v1138 = vpop.f32.mrb[0].mxu0
        %1139 = vdwg.mxu0
        %v1141 = vsel %vm975, %v1050, 0
        %1143 = vmatprep.subr.bf16.mxu0 0
        %1144 = vmatpush1.bf16.msra.mxu0 %v775
        %1145 = vmatprep.subr.bf16.mxu0 0
        %1146 = vmatpush1.bf16.msra.mxu0 0
        %1147 = vmatprep.subr.bf16.mxu0 0
        %1148 = vmatpush1.bf16.msra.mxu0 0
        %1149 = vmatprep.subr.bf16.mxu0 0
        %1150 = vmatpush1.bf16.msra.mxu0 0
        %1151 = vmatprep.subr.bf16.mxu0 0
        %1152 = vmatpush1.bf16.msra.mxu0 0
        %1153 = vmatprep.subr.bf16.mxu0 0
        %1154 = vmatpush1.bf16.msra.mxu0 0
        %1155 = vmatprep.subr.bf16.mxu0 0
        %1156 = vmatpush1.bf16.msra.mxu0 0
        %1157 = vmatprep.subr.bf16.mxu0 0
        %1158 = vmatpush1.bf16.msra.mxu0 0
        %1159 = vmatprep.subr.bf16.mxu0 0
        %1160 = vmatpush1.bf16.msra.mxu0 0
        %1161 = vmatprep.subr.bf16.mxu0 0
        %1162 = vmatpush1.bf16.msra.mxu0 0
        %1163 = vmatprep.subr.bf16.mxu0 0
        %1164 = vmatpush1.bf16.msra.mxu0 0
        %1165 = vmatprep.subr.bf16.mxu0 0
        %1166 = vmatpush1.bf16.msra.mxu0 0
        %1167 = vmatprep.subr.bf16.mxu0 0
        %1168 = vmatpush1.bf16.msra.mxu0 0
        %1169 = vmatprep.subr.bf16.mxu0 0
        %1170 = vmatpush1.bf16.msra.mxu0 0
        %1171 = vmatprep.subr.bf16.mxu0 0
        %1172 = vmatpush1.bf16.msra.mxu0 0
        %1173 = vmatprep.subr.bf16.mxu0 0
        %1174 = vmatpush1.bf16.msra.mxu0 0
        %1175 = vmatprep.mubr.bf16.mxu0 0
        %1176 = vmatmul.mubr.bf16.gmra.mrb[0].mxu0 %v1141
        %v1177 = vpop.f32.mrb[0].mxu0
        %v1178 = vadd.f32 0.0, %v1177
        %v1179 = vpop.f32.mrb[0].mxu0
        %v1180 = vpop.f32.mrb[0].mxu0
        %v1181 = vadd.f32 0.0, %v1180
        %v1182 = vpop.f32.mrb[0].mxu0
        %1183 = vdwg.mxu0
        %v1185 = vsel %vm975, %v1051, 0
        %1187 = vmatprep.subr.bf16.mxu0 0
        %1188 = vmatpush1.bf16.msra.mxu0 %v776
        %1189 = vmatprep.subr.bf16.mxu0 0
        %1190 = vmatpush1.bf16.msra.mxu0 0
        %1191 = vmatprep.subr.bf16.mxu0 0
        %1192 = vmatpush1.bf16.msra.mxu0 0
        %1193 = vmatprep.subr.bf16.mxu0 0
        %1194 = vmatpush1.bf16.msra.mxu0 0
        %1195 = vmatprep.subr.bf16.mxu0 0
        %1196 = vmatpush1.bf16.msra.mxu0 0
        %1197 = vmatprep.subr.bf16.mxu0 0
        %1198 = vmatpush1.bf16.msra.mxu0 0
        %1199 = vmatprep.subr.bf16.mxu0 0
        %1200 = vmatpush1.bf16.msra.mxu0 0
        %1201 = vmatprep.subr.bf16.mxu0 0
        %1202 = vmatpush1.bf16.msra.mxu0 0
        %1203 = vmatprep.subr.bf16.mxu0 0
        %1204 = vmatpush1.bf16.msra.mxu0 0
        %1205 = vmatprep.subr.bf16.mxu0 0
        %1206 = vmatpush1.bf16.msra.mxu0 0
        %1207 = vmatprep.subr.bf16.mxu0 0
        %1208 = vmatpush1.bf16.msra.mxu0 0
        %1209 = vmatprep.subr.bf16.mxu0 0
        %1210 = vmatpush1.bf16.msra.mxu0 0
        %1211 = vmatprep.subr.bf16.mxu0 0
        %1212 = vmatpush1.bf16.msra.mxu0 0
        %1213 = vmatprep.subr.bf16.mxu0 0
        %1214 = vmatpush1.bf16.msra.mxu0 0
        %1215 = vmatprep.subr.bf16.mxu0 0
        %1216 = vmatpush1.bf16.msra.mxu0 0
        %1217 = vmatprep.subr.bf16.mxu0 0
        %1218 = vmatpush1.bf16.msra.mxu0 0
        %1219 = vmatprep.mubr.bf16.mxu0 0
        %1220 = vmatmul.mubr.bf16.gmra.mrb[0].mxu0 %v1185
        %v1221 = vpop.f32.mrb[0].mxu0
        %v1222 = vadd.f32 0.0, %v1221
        %v1223 = vpop.f32.mrb[0].mxu0
        %v1224 = vpop.f32.mrb[0].mxu0
        %v1225 = vadd.f32 0.0, %v1224
        %v1226 = vpop.f32.mrb[0].mxu0
        %1227 = vdwg.mxu0
        // While loop
        $region73: #{tpu_custom_call.1} parent=55 // loop_pre_header
          _
        $region74: #{tpu_custom_call.1} parent=55 // loop_header
          %s1229 = sphi 0, %s1231
          %p1230 = scmp.ge.s32.totalorder %s1229, %s32
          %v1234 = vphi %v978, %v1473
          %v1235 = vphi %v981, %v1474
          %v1236 = vphi %v984, %v1475
          %v1237 = vphi %v987, %v1476
          %v1238 = vphi %v990, %v1477
          %v1239 = vphi %v993, %v1478
          %v1240 = vphi %v996, %v1479
          %v1241 = vphi %v999, %v1480
          %v1242 = vphi %v1026, %v1561
          %v1243 = vphi %v1029, %v1562
          %v1244 = vphi %v1032, %v1563
          %v1245 = vphi %v1035, %v1564
          %v1246 = vphi %v1038, %v1565
          %v1247 = vphi %v1041, %v1566
          %v1248 = vphi %v1044, %v1567
          %v1249 = vphi %v1047, %v1568
          %v1250 = vphi %v1090, %v1757
          %v1251 = vphi %v1093, %v1758
          %v1252 = vphi %v1134, %v1759
          %v1253 = vphi %v1137, %v1760
          %v1254 = vphi %v1178, %v1761
          %v1255 = vphi %v1181, %v1762
          %v1256 = vphi %v1222, %v1763
          %v1257 = vphi %v1225, %v1764
        $region75: #{tpu_custom_call.1} parent=55 // loop_header_branch
          %1233 = sbr.rel (%p1230) target = $region79
        $region76: #{tpu_custom_call.1} parent=55 // loop_body
          %s1258 = smul.u32 %s1229, 16
          %s1259 = sshra.s32 %s1258, 4
          %s1260 = sand.u32 %s1258, 15
          %s1261 = smul.addr %s1259, 8
          %s1262 = scalar_lea.vmem [#allocation3], %s1261
          %v1263 = vld [vmem:[%s1262] sm:$0xff]
          %v1264 = vld [vmem:[%s1262 + $0x10] sm:$0xff]
          %v1265 = vld [vmem:[%s1262 + $0x20] sm:$0xff]
          %v1266 = vld [vmem:[%s1262 + $0x30] sm:$0xff]
          %s1267 = smul.addr %s1259, 8
          %s1268 = scalar_lea.vmem [#allocation4], %s1267
          %v1269 = vld [vmem:[%s1268] sm:$0xff]
          %v1270 = vld [vmem:[%s1268 + $0x10] sm:$0xff]
          %v1271 = vld [vmem:[%s1268 + $0x20] sm:$0xff]
          %v1272 = vld [vmem:[%s1268 + $0x30] sm:$0xff]
          %v1274 = vsel %vm786, %v1263, 0
          %1276 = vmatprep.subr.bf16.mxu0 0
          %1277 = vmatpush1.bf16.xpose.msra.mxu0 %v1274
          %1278 = vmatprep.subr.bf16.mxu0 0
          %1279 = vmatpush1.bf16.xpose.msra.mxu0 0
          %1280 = vmatprep.subr.bf16.mxu0 0
          %1281 = vmatpush1.bf16.xpose.msra.mxu0 0
          %1282 = vmatprep.subr.bf16.mxu0 0
          %1283 = vmatpush1.bf16.xpose.msra.mxu0 0
          %1284 = vmatprep.subr.bf16.mxu0 0
          %1285 = vmatpush1.bf16.xpose.msra.mxu0 0
          %1286 = vmatprep.subr.bf16.mxu0 0
          %1287 = vmatpush1.bf16.xpose.msra.mxu0 0
          %1288 = vmatprep.subr.bf16.mxu0 0
          %1289 = vmatpush1.bf16.xpose.msra.mxu0 0
          %1290 = vmatprep.subr.bf16.mxu0 0
          %1291 = vmatpush1.bf16.xpose.msra.mxu0 0
          %1292 = vmatprep.subr.bf16.mxu0 0
          %1293 = vmatpush1.bf16.xpose.msra.mxu0 0
          %1294 = vmatprep.subr.bf16.mxu0 0
          %1295 = vmatpush1.bf16.xpose.msra.mxu0 0
          %1296 = vmatprep.subr.bf16.mxu0 0
          %1297 = vmatpush1.bf16.xpose.msra.mxu0 0
          %1298 = vmatprep.subr.bf16.mxu0 0
          %1299 = vmatpush1.bf16.xpose.msra.mxu0 0
          %1300 = vmatprep.subr.bf16.mxu0 0
          %1301 = vmatpush1.bf16.xpose.msra.mxu0 0
          %1302 = vmatprep.subr.bf16.mxu0 0
          %1303 = vmatpush1.bf16.xpose.msra.mxu0 0
          %1304 = vmatprep.subr.bf16.mxu0 0
          %1305 = vmatpush1.bf16.xpose.msra.mxu0 0
          %1306 = vmatprep.subr.bf16.mxu0 0
          %1307 = vmatpush1.bf16.xpose.msra.mxu0 0
          %1308 = vmatprep.mubr.bf16.mxu0 0
          %1309 = vmatmul.mubr.bf16.gmra.mrb[0].mxu0 %v788
          %v1310 = vpop.f32.mrb[0].mxu0
          %v1311 = vadd.f32 0.0, %v1310
          %v1312 = vpop.f32.mrb[0].mxu0
          %v1313 = vpop.f32.mrb[0].mxu0
          %v1314 = vadd.f32 0.0, %v1313
          %v1315 = vpop.f32.mrb[0].mxu0
          %1316 = vdwg.mxu0
          %v1318 = vsel %vm786, %v1264, 0
          %1320 = vmatprep.subr.bf16.mxu0 0
          %1321 = vmatpush1.bf16.xpose.msra.mxu0 %v1318
          %1322 = vmatprep.subr.bf16.mxu0 0
          %1323 = vmatpush1.bf16.xpose.msra.mxu0 0
          %1324 = vmatprep.subr.bf16.mxu0 0
          %1325 = vmatpush1.bf16.xpose.msra.mxu0 0
          %1326 = vmatprep.subr.bf16.mxu0 0
          %1327 = vmatpush1.bf16.xpose.msra.mxu0 0
          %1328 = vmatprep.subr.bf16.mxu0 0
          %1329 = vmatpush1.bf16.xpose.msra.mxu0 0
          %1330 = vmatprep.subr.bf16.mxu0 0
          %1331 = vmatpush1.bf16.xpose.msra.mxu0 0
          %1332 = vmatprep.subr.bf16.mxu0 0
          %1333 = vmatpush1.bf16.xpose.msra.mxu0 0
          %1334 = vmatprep.subr.bf16.mxu0 0
          %1335 = vmatpush1.bf16.xpose.msra.mxu0 0
          %1336 = vmatprep.subr.bf16.mxu0 0
          %1337 = vmatpush1.bf16.xpose.msra.mxu0 0
          %1338 = vmatprep.subr.bf16.mxu0 0
          %1339 = vmatpush1.bf16.xpose.msra.mxu0 0
          %1340 = vmatprep.subr.bf16.mxu0 0
          %1341 = vmatpush1.bf16.xpose.msra.mxu0 0
          %1342 = vmatprep.subr.bf16.mxu0 0
          %1343 = vmatpush1.bf16.xpose.msra.mxu0 0
          %1344 = vmatprep.subr.bf16.mxu0 0
          %1345 = vmatpush1.bf16.xpose.msra.mxu0 0
          %1346 = vmatprep.subr.bf16.mxu0 0
          %1347 = vmatpush1.bf16.xpose.msra.mxu0 0
          %1348 = vmatprep.subr.bf16.mxu0 0
          %1349 = vmatpush1.bf16.xpose.msra.mxu0 0
          %1350 = vmatprep.subr.bf16.mxu0 0
          %1351 = vmatpush1.bf16.xpose.msra.mxu0 0
          %1352 = vmatprep.mubr.bf16.mxu0 0
          %1353 = vmatmul.mubr.bf16.gmra.mrb[0].mxu0 %v835
          %v1354 = vpop.f32.mrb[0].mxu0
          %v1355 = vadd.f32 0.0, %v1354
          %v1356 = vpop.f32.mrb[0].mxu0
          %v1357 = vpop.f32.mrb[0].mxu0
          %v1358 = vadd.f32 0.0, %v1357
          %v1359 = vpop.f32.mrb[0].mxu0
          %1360 = vdwg.mxu0
          %v1362 = vsel %vm786, %v1265, 0
          %1364 = vmatprep.subr.bf16.mxu0 0
          %1365 = vmatpush1.bf16.xpose.msra.mxu0 %v1362
          %1366 = vmatprep.subr.bf16.mxu0 0
          %1367 = vmatpush1.bf16.xpose.msra.mxu0 0
          %1368 = vmatprep.subr.bf16.mxu0 0
          %1369 = vmatpush1.bf16.xpose.msra.mxu0 0
          %1370 = vmatprep.subr.bf16.mxu0 0
          %1371 = vmatpush1.bf16.xpose.msra.mxu0 0
          %1372 = vmatprep.subr.bf16.mxu0 0
          %1373 = vmatpush1.bf16.xpose.msra.mxu0 0
          %1374 = vmatprep.subr.bf16.mxu0 0
          %1375 = vmatpush1.bf16.xpose.msra.mxu0 0
          %1376 = vmatprep.subr.bf16.mxu0 0
          %1377 = vmatpush1.bf16.xpose.msra.mxu0 0
          %1378 = vmatprep.subr.bf16.mxu0 0
          %1379 = vmatpush1.bf16.xpose.msra.mxu0 0
          %1380 = vmatprep.subr.bf16.mxu0 0
          %1381 = vmatpush1.bf16.xpose.msra.mxu0 0
          %1382 = vmatprep.subr.bf16.mxu0 0
          %1383 = vmatpush1.bf16.xpose.msra.mxu0 0
          %1384 = vmatprep.subr.bf16.mxu0 0
          %1385 = vmatpush1.bf16.xpose.msra.mxu0 0
          %1386 = vmatprep.subr.bf16.mxu0 0
          %1387 = vmatpush1.bf16.xpose.msra.mxu0 0
          %1388 = vmatprep.subr.bf16.mxu0 0
          %1389 = vmatpush1.bf16.xpose.msra.mxu0 0
          %1390 = vmatprep.subr.bf16.mxu0 0
          %1391 = vmatpush1.bf16.xpose.msra.mxu0 0
          %1392 = vmatprep.subr.bf16.mxu0 0
          %1393 = vmatpush1.bf16.xpose.msra.mxu0 0
          %1394 = vmatprep.subr.bf16.mxu0 0
          %1395 = vmatpush1.bf16.xpose.msra.mxu0 0
          %1396 = vmatprep.mubr.bf16.mxu0 0
          %1397 = vmatmul.mubr.bf16.gmra.mrb[0].mxu0 %v882
          %v1398 = vpop.f32.mrb[0].mxu0
          %v1399 = vadd.f32 0.0, %v1398
          %v1400 = vpop.f32.mrb[0].mxu0
          %v1401 = vpop.f32.mrb[0].mxu0
          %v1402 = vadd.f32 0.0, %v1401
          %v1403 = vpop.f32.mrb[0].mxu0
          %1404 = vdwg.mxu0
          %v1406 = vsel %vm786, %v1266, 0
          %1408 = vmatprep.subr.bf16.mxu0 0
          %1409 = vmatpush1.bf16.xpose.msra.mxu0 %v1406
          %1410 = vmatprep.subr.bf16.mxu0 0
          %1411 = vmatpush1.bf16.xpose.msra.mxu0 0
          %1412 = vmatprep.subr.bf16.mxu0 0
          %1413 = vmatpush1.bf16.xpose.msra.mxu0 0
          %1414 = vmatprep.subr.bf16.mxu0 0
          %1415 = vmatpush1.bf16.xpose.msra.mxu0 0
          %1416 = vmatprep.subr.bf16.mxu0 0
          %1417 = vmatpush1.bf16.xpose.msra.mxu0 0
          %1418 = vmatprep.subr.bf16.mxu0 0
          %1419 = vmatpush1.bf16.xpose.msra.mxu0 0
          %1420 = vmatprep.subr.bf16.mxu0 0
          %1421 = vmatpush1.bf16.xpose.msra.mxu0 0
          %1422 = vmatprep.subr.bf16.mxu0 0
          %1423 = vmatpush1.bf16.xpose.msra.mxu0 0
          %1424 = vmatprep.subr.bf16.mxu0 0
          %1425 = vmatpush1.bf16.xpose.msra.mxu0 0
          %1426 = vmatprep.subr.bf16.mxu0 0
          %1427 = vmatpush1.bf16.xpose.msra.mxu0 0
          %1428 = vmatprep.subr.bf16.mxu0 0
          %1429 = vmatpush1.bf16.xpose.msra.mxu0 0
          %1430 = vmatprep.subr.bf16.mxu0 0
          %1431 = vmatpush1.bf16.xpose.msra.mxu0 0
          %1432 = vmatprep.subr.bf16.mxu0 0
          %1433 = vmatpush1.bf16.xpose.msra.mxu0 0
          %1434 = vmatprep.subr.bf16.mxu0 0
          %1435 = vmatpush1.bf16.xpose.msra.mxu0 0
          %1436 = vmatprep.subr.bf16.mxu0 0
          %1437 = vmatpush1.bf16.xpose.msra.mxu0 0
          %1438 = vmatprep.subr.bf16.mxu0 0
          %1439 = vmatpush1.bf16.xpose.msra.mxu0 0
          %1440 = vmatprep.mubr.bf16.mxu0 0
          %1441 = vmatmul.mubr.bf16.gmra.mrb[0].mxu0 %v929
          %v1442 = vpop.f32.mrb[0].mxu0
          %v1443 = vadd.f32 0.0, %v1442
          %v1444 = vpop.f32.mrb[0].mxu0
          %v1445 = vpop.f32.mrb[0].mxu0
          %v1446 = vadd.f32 0.0, %v1445
          %v1447 = vpop.f32.mrb[0].mxu0
          %1448 = vdwg.mxu0
          %v1449 = vsel %vm975, %v1311, -inf
          %1450 = vmax.xlane.f32.xlu0 %v1449
          %v1451 = vpop.xlane.xlu0 %1450
          %v1452 = vsel %vm975, %v1314, -inf
          %1453 = vmax.xlane.f32.xlu0 %v1452
          %v1454 = vpop.xlane.xlu0 %1453
          %v1455 = vsel %vm975, %v1355, -inf
          %1456 = vmax.xlane.f32.xlu0 %v1455
          %v1457 = vpop.xlane.xlu0 %1456
          %v1458 = vsel %vm975, %v1358, -inf
          %1459 = vmax.xlane.f32.xlu0 %v1458
          %v1460 = vpop.xlane.xlu0 %1459
          %v1461 = vsel %vm975, %v1399, -inf
          %1462 = vmax.xlane.f32.xlu0 %v1461
          %v1463 = vpop.xlane.xlu0 %1462
          %v1464 = vsel %vm975, %v1402, -inf
          %1465 = vmax.xlane.f32.xlu0 %v1464
          %v1466 = vpop.xlane.xlu0 %1465
          %v1467 = vsel %vm975, %v1443, -inf
          %1468 = vmax.xlane.f32.xlu0 %v1467
          %v1469 = vpop.xlane.xlu0 %1468
          %v1470 = vsel %vm975, %v1446, -inf
          %1471 = vmax.xlane.f32.xlu0 %v1470
          %v1472 = vpop.xlane.xlu0 %1471
          %v1473 = vmax.f32 %v1234, %v1451
          %v1474 = vmax.f32 %v1235, %v1454
          %v1475 = vmax.f32 %v1236, %v1457
          %v1476 = vmax.f32 %v1237, %v1460
          %v1477 = vmax.f32 %v1238, %v1463
          %v1478 = vmax.f32 %v1239, %v1466
          %v1479 = vmax.f32 %v1240, %v1469
          %v1480 = vmax.f32 %v1241, %v1472
          %v1481 = vsub.f32 %v1234, %v1473
          %v1482 = vsub.f32 %v1235, %v1474
          %v1483 = vsub.f32 %v1236, %v1475
          %v1484 = vsub.f32 %v1237, %v1476
          %v1485 = vsub.f32 %v1238, %v1477
          %v1486 = vsub.f32 %v1239, %v1478
          %v1487 = vsub.f32 %v1240, %v1479
          %v1488 = vsub.f32 %v1241, %v1480
          %v1489 = vmul.f32 %v1481, 1.442695
          %v1490 = vpow.pop %v1489
          %v1491 = vmul.f32 %v1482, 1.442695
          %v1492 = vpow.pop %v1491
          %v1493 = vmul.f32 %v1483, 1.442695
          %v1494 = vpow.pop %v1493
          %v1495 = vmul.f32 %v1484, 1.442695
          %v1496 = vpow.pop %v1495
          %v1497 = vmul.f32 %v1485, 1.442695
          %v1498 = vpow.pop %v1497
          %v1499 = vmul.f32 %v1486, 1.442695
          %v1500 = vpow.pop %v1499
          %v1501 = vmul.f32 %v1487, 1.442695
          %v1502 = vpow.pop %v1501
          %v1503 = vmul.f32 %v1488, 1.442695
          %v1504 = vpow.pop %v1503
          %v1505 = vsub.f32 %v1311, %v1473
          %v1506 = vsub.f32 %v1314, %v1474
          %v1507 = vsub.f32 %v1355, %v1475
          %v1508 = vsub.f32 %v1358, %v1476
          %v1509 = vsub.f32 %v1399, %v1477
          %v1510 = vsub.f32 %v1402, %v1478
          %v1511 = vsub.f32 %v1443, %v1479
          %v1512 = vsub.f32 %v1446, %v1480
          %v1513 = vmul.f32 %v1505, 1.442695
          %v1514 = vpow.pop %v1513
          %v1515 = vmul.f32 %v1506, 1.442695
          %v1516 = vpow.pop %v1515
          %v1517 = vmul.f32 %v1507, 1.442695
          %v1518 = vpow.pop %v1517
          %v1519 = vmul.f32 %v1508, 1.442695
          %v1520 = vpow.pop %v1519
          %v1521 = vmul.f32 %v1509, 1.442695
          %v1522 = vpow.pop %v1521
          %v1523 = vmul.f32 %v1510, 1.442695
          %v1524 = vpow.pop %v1523
          %v1525 = vmul.f32 %v1511, 1.442695
          %v1526 = vpow.pop %v1525
          %v1527 = vmul.f32 %v1512, 1.442695
          %v1528 = vpow.pop %v1527
          %v1529 = vmul.f32 %v1490, %v1242
          %v1530 = vmul.f32 %v1492, %v1243
          %v1531 = vmul.f32 %v1494, %v1244
          %v1532 = vmul.f32 %v1496, %v1245
          %v1533 = vmul.f32 %v1498, %v1246
          %v1534 = vmul.f32 %v1500, %v1247
          %v1535 = vmul.f32 %v1502, %v1248
          %v1536 = vmul.f32 %v1504, %v1249
          %v1537 = vsel %vm975, %v1514, 0.0
          %1538 = vadd.xlane.f32.xlu0 %v1537
          %v1539 = vpop.xlane.xlu0 %1538
          %v1540 = vsel %vm975, %v1516, 0.0
          %1541 = vadd.xlane.f32.xlu0 %v1540
          %v1542 = vpop.xlane.xlu0 %1541
          %v1543 = vsel %vm975, %v1518, 0.0
          %1544 = vadd.xlane.f32.xlu0 %v1543
          %v1545 = vpop.xlane.xlu0 %1544
          %v1546 = vsel %vm975, %v1520, 0.0
          %1547 = vadd.xlane.f32.xlu0 %v1546
          %v1548 = vpop.xlane.xlu0 %1547
          %v1549 = vsel %vm975, %v1522, 0.0
          %1550 = vadd.xlane.f32.xlu0 %v1549
          %v1551 = vpop.xlane.xlu0 %1550
          %v1552 = vsel %vm975, %v1524, 0.0
          %1553 = vadd.xlane.f32.xlu0 %v1552
          %v1554 = vpop.xlane.xlu0 %1553
          %v1555 = vsel %vm975, %v1526, 0.0
          %1556 = vadd.xlane.f32.xlu0 %v1555
          %v1557 = vpop.xlane.xlu0 %1556
          %v1558 = vsel %vm975, %v1528, 0.0
          %1559 = vadd.xlane.f32.xlu0 %v1558
          %v1560 = vpop.xlane.xlu0 %1559
          %v1561 = vadd.f32 %v1529, %v1539
          %v1562 = vadd.f32 %v1530, %v1542
          %v1563 = vadd.f32 %v1531, %v1545
          %v1564 = vadd.f32 %v1532, %v1548
          %v1565 = vadd.f32 %v1533, %v1551
          %v1566 = vadd.f32 %v1534, %v1554
          %v1567 = vadd.f32 %v1535, %v1557
          %v1568 = vadd.f32 %v1536, %v1560
          %v1569 = vmul.f32 %v1490, %v1250
          %v1570 = vmul.f32 %v1492, %v1251
          %v1571 = vmul.f32 %v1494, %v1252
          %v1572 = vmul.f32 %v1496, %v1253
          %v1573 = vmul.f32 %v1498, %v1254
          %v1574 = vmul.f32 %v1500, %v1255
          %v1575 = vmul.f32 %v1502, %v1256
          %v1576 = vmul.f32 %v1504, %v1257
          %v1577 = vpack.c.bf16 %v1516, %v1514
          %v1578 = vpack.c.bf16 %v1520, %v1518
          %v1579 = vpack.c.bf16 %v1524, %v1522
          %v1580 = vpack.c.bf16 %v1528, %v1526
          %v1582 = vsel %vm975, %v1577, 0
          %1584 = vmatprep.subr.bf16.mxu0 0
          %1585 = vmatpush1.bf16.msra.mxu0 %v1269
          %1586 = vmatprep.subr.bf16.mxu0 0
          %1587 = vmatpush1.bf16.msra.mxu0 0
          %1588 = vmatprep.subr.bf16.mxu0 0
          %1589 = vmatpush1.bf16.msra.mxu0 0
          %1590 = vmatprep.subr.bf16.mxu0 0
          %1591 = vmatpush1.bf16.msra.mxu0 0
          %1592 = vmatprep.subr.bf16.mxu0 0
          %1593 = vmatpush1.bf16.msra.mxu0 0
          %1594 = vmatprep.subr.bf16.mxu0 0
          %1595 = vmatpush1.bf16.msra.mxu0 0
          %1596 = vmatprep.subr.bf16.mxu0 0
          %1597 = vmatpush1.bf16.msra.mxu0 0
          %1598 = vmatprep.subr.bf16.mxu0 0
          %1599 = vmatpush1.bf16.msra.mxu0 0
          %1600 = vmatprep.subr.bf16.mxu0 0
          %1601 = vmatpush1.bf16.msra.mxu0 0
          %1602 = vmatprep.subr.bf16.mxu0 0
          %1603 = vmatpush1.bf16.msra.mxu0 0
          %1604 = vmatprep.subr.bf16.mxu0 0
          %1605 = vmatpush1.bf16.msra.mxu0 0
          %1606 = vmatprep.subr.bf16.mxu0 0
          %1607 = vmatpush1.bf16.msra.mxu0 0
          %1608 = vmatprep.subr.bf16.mxu0 0
          %1609 = vmatpush1.bf16.msra.mxu0 0
          %1610 = vmatprep.subr.bf16.mxu0 0
          %1611 = vmatpush1.bf16.msra.mxu0 0
          %1612 = vmatprep.subr.bf16.mxu0 0
          %1613 = vmatpush1.bf16.msra.mxu0 0
          %1614 = vmatprep.subr.bf16.mxu0 0
          %1615 = vmatpush1.bf16.msra.mxu0 0
          %1616 = vmatprep.mubr.bf16.mxu0 0
          %1617 = vmatmul.mubr.bf16.gmra.mrb[0].mxu0 %v1582
          %v1618 = vpop.f32.mrb[0].mxu0
          %v1619 = vadd.f32 0.0, %v1618
          %v1620 = vpop.f32.mrb[0].mxu0
          %v1621 = vpop.f32.mrb[0].mxu0
          %v1622 = vadd.f32 0.0, %v1621
          %v1623 = vpop.f32.mrb[0].mxu0
          %1624 = vdwg.mxu0
          %v1626 = vsel %vm975, %v1578, 0
          %1628 = vmatprep.subr.bf16.mxu0 0
          %1629 = vmatpush1.bf16.msra.mxu0 %v1270
          %1630 = vmatprep.subr.bf16.mxu0 0
          %1631 = vmatpush1.bf16.msra.mxu0 0
          %1632 = vmatprep.subr.bf16.mxu0 0
          %1633 = vmatpush1.bf16.msra.mxu0 0
          %1634 = vmatprep.subr.bf16.mxu0 0
          %1635 = vmatpush1.bf16.msra.mxu0 0
          %1636 = vmatprep.subr.bf16.mxu0 0
          %1637 = vmatpush1.bf16.msra.mxu0 0
          %1638 = vmatprep.subr.bf16.mxu0 0
          %1639 = vmatpush1.bf16.msra.mxu0 0
          %1640 = vmatprep.subr.bf16.mxu0 0
          %1641 = vmatpush1.bf16.msra.mxu0 0
          %1642 = vmatprep.subr.bf16.mxu0 0
          %1643 = vmatpush1.bf16.msra.mxu0 0
          %1644 = vmatprep.subr.bf16.mxu0 0
          %1645 = vmatpush1.bf16.msra.mxu0 0
          %1646 = vmatprep.subr.bf16.mxu0 0
          %1647 = vmatpush1.bf16.msra.mxu0 0
          %1648 = vmatprep.subr.bf16.mxu0 0
          %1649 = vmatpush1.bf16.msra.mxu0 0
          %1650 = vmatprep.subr.bf16.mxu0 0
          %1651 = vmatpush1.bf16.msra.mxu0 0
          %1652 = vmatprep.subr.bf16.mxu0 0
          %1653 = vmatpush1.bf16.msra.mxu0 0
          %1654 = vmatprep.subr.bf16.mxu0 0
          %1655 = vmatpush1.bf16.msra.mxu0 0
          %1656 = vmatprep.subr.bf16.mxu0 0
          %1657 = vmatpush1.bf16.msra.mxu0 0
          %1658 = vmatprep.subr.bf16.mxu0 0
          %1659 = vmatpush1.bf16.msra.mxu0 0
          %1660 = vmatprep.mubr.bf16.mxu0 0
          %1661 = vmatmul.mubr.bf16.gmra.mrb[0].mxu0 %v1626
          %v1662 = vpop.f32.mrb[0].mxu0
          %v1663 = vadd.f32 0.0, %v1662
          %v1664 = vpop.f32.mrb[0].mxu0
          %v1665 = vpop.f32.mrb[0].mxu0
          %v1666 = vadd.f32 0.0, %v1665
          %v1667 = vpop.f32.mrb[0].mxu0
          %1668 = vdwg.mxu0
          %v1670 = vsel %vm975, %v1579, 0
          %1672 = vmatprep.subr.bf16.mxu0 0
          %1673 = vmatpush1.bf16.msra.mxu0 %v1271
          %1674 = vmatprep.subr.bf16.mxu0 0
          %1675 = vmatpush1.bf16.msra.mxu0 0
          %1676 = vmatprep.subr.bf16.mxu0 0
          %1677 = vmatpush1.bf16.msra.mxu0 0
          %1678 = vmatprep.subr.bf16.mxu0 0
          %1679 = vmatpush1.bf16.msra.mxu0 0
          %1680 = vmatprep.subr.bf16.mxu0 0
          %1681 = vmatpush1.bf16.msra.mxu0 0
          %1682 = vmatprep.subr.bf16.mxu0 0
          %1683 = vmatpush1.bf16.msra.mxu0 0
          %1684 = vmatprep.subr.bf16.mxu0 0
          %1685 = vmatpush1.bf16.msra.mxu0 0
          %1686 = vmatprep.subr.bf16.mxu0 0
          %1687 = vmatpush1.bf16.msra.mxu0 0
          %1688 = vmatprep.subr.bf16.mxu0 0
          %1689 = vmatpush1.bf16.msra.mxu0 0
          %1690 = vmatprep.subr.bf16.mxu0 0
          %1691 = vmatpush1.bf16.msra.mxu0 0
          %1692 = vmatprep.subr.bf16.mxu0 0
          %1693 = vmatpush1.bf16.msra.mxu0 0
          %1694 = vmatprep.subr.bf16.mxu0 0
          %1695 = vmatpush1.bf16.msra.mxu0 0
          %1696 = vmatprep.subr.bf16.mxu0 0
          %1697 = vmatpush1.bf16.msra.mxu0 0
          %1698 = vmatprep.subr.bf16.mxu0 0
          %1699 = vmatpush1.bf16.msra.mxu0 0
          %1700 = vmatprep.subr.bf16.mxu0 0
          %1701 = vmatpush1.bf16.msra.mxu0 0
          %1702 = vmatprep.subr.bf16.mxu0 0
          %1703 = vmatpush1.bf16.msra.mxu0 0
          %1704 = vmatprep.mubr.bf16.mxu0 0
          %1705 = vmatmul.mubr.bf16.gmra.mrb[0].mxu0 %v1670
          %v1706 = vpop.f32.mrb[0].mxu0
          %v1707 = vadd.f32 0.0, %v1706
          %v1708 = vpop.f32.mrb[0].mxu0
          %v1709 = vpop.f32.mrb[0].mxu0
          %v1710 = vadd.f32 0.0, %v1709
          %v1711 = vpop.f32.mrb[0].mxu0
          %1712 = vdwg.mxu0
          %v1714 = vsel %vm975, %v1580, 0
          %1716 = vmatprep.subr.bf16.mxu0 0
          %1717 = vmatpush1.bf16.msra.mxu0 %v1272
          %1718 = vmatprep.subr.bf16.mxu0 0
          %1719 = vmatpush1.bf16.msra.mxu0 0
          %1720 = vmatprep.subr.bf16.mxu0 0
          %1721 = vmatpush1.bf16.msra.mxu0 0
          %1722 = vmatprep.subr.bf16.mxu0 0
          %1723 = vmatpush1.bf16.msra.mxu0 0
          %1724 = vmatprep.subr.bf16.mxu0 0
          %1725 = vmatpush1.bf16.msra.mxu0 0
          %1726 = vmatprep.subr.bf16.mxu0 0
          %1727 = vmatpush1.bf16.msra.mxu0 0
          %1728 = vmatprep.subr.bf16.mxu0 0
          %1729 = vmatpush1.bf16.msra.mxu0 0
          %1730 = vmatprep.subr.bf16.mxu0 0
          %1731 = vmatpush1.bf16.msra.mxu0 0
          %1732 = vmatprep.subr.bf16.mxu0 0
          %1733 = vmatpush1.bf16.msra.mxu0 0
          %1734 = vmatprep.subr.bf16.mxu0 0
          %1735 = vmatpush1.bf16.msra.mxu0 0
          %1736 = vmatprep.subr.bf16.mxu0 0
          %1737 = vmatpush1.bf16.msra.mxu0 0
          %1738 = vmatprep.subr.bf16.mxu0 0
          %1739 = vmatpush1.bf16.msra.mxu0 0
          %1740 = vmatprep.subr.bf16.mxu0 0
          %1741 = vmatpush1.bf16.msra.mxu0 0
          %1742 = vmatprep.subr.bf16.mxu0 0
          %1743 = vmatpush1.bf16.msra.mxu0 0
          %1744 = vmatprep.subr.bf16.mxu0 0
          %1745 = vmatpush1.bf16.msra.mxu0 0
          %1746 = vmatprep.subr.bf16.mxu0 0
          %1747 = vmatpush1.bf16.msra.mxu0 0
          %1748 = vmatprep.mubr.bf16.mxu0 0
          %1749 = vmatmul.mubr.bf16.gmra.mrb[0].mxu0 %v1714
          %v1750 = vpop.f32.mrb[0].mxu0
          %v1751 = vadd.f32 0.0, %v1750
          %v1752 = vpop.f32.mrb[0].mxu0
          %v1753 = vpop.f32.mrb[0].mxu0
          %v1754 = vadd.f32 0.0, %v1753
          %v1755 = vpop.f32.mrb[0].mxu0
          %1756 = vdwg.mxu0
          %v1757 = vadd.f32 %v1569, %v1619
          %v1758 = vadd.f32 %v1570, %v1622
          %v1759 = vadd.f32 %v1571, %v1663
          %v1760 = vadd.f32 %v1572, %v1666
          %v1761 = vadd.f32 %v1573, %v1707
          %v1762 = vadd.f32 %v1574, %v1710
          %v1763 = vadd.f32 %v1575, %v1751
          %v1764 = vadd.f32 %v1576, %v1754
        $region77: #{tpu_custom_call.1} parent=55 // loop_footer
          %s1231 = sadd.s32 %s1229, 1
        $region78: #{tpu_custom_call.1} parent=55 // loop_footer_branch
          %1228 = sbr.rel target = $region74
        $region79: #{tpu_custom_call.1} parent=55 // loop_exit
          _
        %v1765 = vrcp.pop %v1242
        %v1766 = vmul.f32 %v1250, %v1765
        %v1767 = vrcp.pop %v1243
        %v1768 = vmul.f32 %v1251, %v1767
        %v1769 = vrcp.pop %v1244
        %v1770 = vmul.f32 %v1252, %v1769
        %v1771 = vrcp.pop %v1245
        %v1772 = vmul.f32 %v1253, %v1771
        %v1773 = vrcp.pop %v1246
        %v1774 = vmul.f32 %v1254, %v1773
        %v1775 = vrcp.pop %v1247
        %v1776 = vmul.f32 %v1255, %v1775
        %v1777 = vrcp.pop %v1248
        %v1778 = vmul.f32 %v1256, %v1777
        %v1779 = vrcp.pop %v1249
        %v1780 = vmul.f32 %v1257, %v1779
        %v1781 = vpack.c.bf16 %v1768, %v1766
        %v1782 = vpack.c.bf16 %v1772, %v1770
        %v1783 = vpack.c.bf16 %v1776, %v1774
        %v1784 = vpack.c.bf16 %v1780, %v1778
        %v1785 = vld [vmem:[#allocation8] sm:$0xf]
        %v1786 = vld [vmem:[#allocation8 + $0x4] sm:$0xf]
        %v1788 = vsel %vm786, %v1782, 0
        %vm1790 = vcmask 1043456
        %v1792 = vsel %vm1790, %v1786, 0
        %1794 = vmatprep.subr.bf16.mxu0 0
        %1795 = vmatpush1.bf16.msra.mxu0 %v1792
        %1796 = vmatprep.subr.bf16.mxu0 0
        %1797 = vmatpush1.bf16.msra.mxu0 0
        %1798 = vmatprep.subr.bf16.mxu0 0
        %1799 = vmatpush1.bf16.msra.mxu0 0
        %1800 = vmatprep.subr.bf16.mxu0 0
        %1801 = vmatpush1.bf16.msra.mxu0 0
        %1802 = vmatprep.subr.bf16.mxu0 0
        %1803 = vmatpush1.bf16.msra.mxu0 0
        %1804 = vmatprep.subr.bf16.mxu0 0
        %1805 = vmatpush1.bf16.msra.mxu0 0
        %1806 = vmatprep.subr.bf16.mxu0 0
        %1807 = vmatpush1.bf16.msra.mxu0 0
        %1808 = vmatprep.subr.bf16.mxu0 0
        %1809 = vmatpush1.bf16.msra.mxu0 0
        %1810 = vmatprep.subr.bf16.mxu0 0
        %1811 = vmatpush1.bf16.msra.mxu0 0
        %1812 = vmatprep.subr.bf16.mxu0 0
        %1813 = vmatpush1.bf16.msra.mxu0 0
        %1814 = vmatprep.subr.bf16.mxu0 0
        %1815 = vmatpush1.bf16.msra.mxu0 0
        %1816 = vmatprep.subr.bf16.mxu0 0
        %1817 = vmatpush1.bf16.msra.mxu0 0
        %1818 = vmatprep.subr.bf16.mxu0 0
        %1819 = vmatpush1.bf16.msra.mxu0 0
        %1820 = vmatprep.subr.bf16.mxu0 0
        %1821 = vmatpush1.bf16.msra.mxu0 0
        %1822 = vmatprep.subr.bf16.mxu0 0
        %1823 = vmatpush1.bf16.msra.mxu0 0
        %1824 = vmatprep.subr.bf16.mxu0 0
        %1825 = vmatpush1.bf16.msra.mxu0 0
        %1826 = vmatprep.mubr.bf16.mxu0 0
        %1827 = vmatmul.mubr.bf16.gmra.mrb[0].mxu0 %v1788
        %v1828 = vpop.f32.mrb[0].mxu0
        %v1829 = vadd.f32 0.0, %v1828
        %v1830 = vpop.f32.mrb[0].mxu0
        %v1831 = vpop.f32.mrb[0].mxu0
        %v1832 = vadd.f32 0.0, %v1831
        %v1833 = vpop.f32.mrb[0].mxu0
        %1834 = vdwg.mxu0
        %v1836 = vsel %vm786, %v1781, 0
        %v1839 = vsel %vm1790, %v1785, 0
        %1841 = vmatprep.subr.bf16.mxu0 0
        %1842 = vmatpush1.bf16.msra.mxu0 %v1839
        %1843 = vmatprep.subr.bf16.mxu0 0
        %1844 = vmatpush1.bf16.msra.mxu0 0
        %1845 = vmatprep.subr.bf16.mxu0 0
        %1846 = vmatpush1.bf16.msra.mxu0 0
        %1847 = vmatprep.subr.bf16.mxu0 0
        %1848 = vmatpush1.bf16.msra.mxu0 0
        %1849 = vmatprep.subr.bf16.mxu0 0
        %1850 = vmatpush1.bf16.msra.mxu0 0
        %1851 = vmatprep.subr.bf16.mxu0 0
        %1852 = vmatpush1.bf16.msra.mxu0 0
        %1853 = vmatprep.subr.bf16.mxu0 0
        %1854 = vmatpush1.bf16.msra.mxu0 0
        %1855 = vmatprep.subr.bf16.mxu0 0
        %1856 = vmatpush1.bf16.msra.mxu0 0
        %1857 = vmatprep.subr.bf16.mxu0 0
        %1858 = vmatpush1.bf16.msra.mxu0 0
        %1859 = vmatprep.subr.bf16.mxu0 0
        %1860 = vmatpush1.bf16.msra.mxu0 0
        %1861 = vmatprep.subr.bf16.mxu0 0
        %1862 = vmatpush1.bf16.msra.mxu0 0
        %1863 = vmatprep.subr.bf16.mxu0 0
        %1864 = vmatpush1.bf16.msra.mxu0 0
        %1865 = vmatprep.subr.bf16.mxu0 0
        %1866 = vmatpush1.bf16.msra.mxu0 0
        %1867 = vmatprep.subr.bf16.mxu0 0
        %1868 = vmatpush1.bf16.msra.mxu0 0
        %1869 = vmatprep.subr.bf16.mxu0 0
        %1870 = vmatpush1.bf16.msra.mxu0 0
        %1871 = vmatprep.subr.bf16.mxu0 0
        %1872 = vmatpush1.bf16.msra.mxu0 0
        %1873 = vmatprep.mubr.bf16.mxu0 0
        %1874 = vmatmul.mubr.bf16.gmra.mrb[0].mxu0 %v1836
        %v1875 = vpop.f32.mrb[0].mxu0
        %v1876 = vadd.f32 %v1829, %v1875
        %v1877 = vpop.f32.mrb[0].mxu0
        %v1878 = vpop.f32.mrb[0].mxu0
        %v1879 = vadd.f32 %v1832, %v1878
        %v1880 = vpop.f32.mrb[0].mxu0
        %1881 = vdwg.mxu0
        %v1882 = vld [vmem:[#allocation8 + $0x8] sm:$0xf]
        %v1884 = vsel %vm786, %v1783, 0
        %v1887 = vsel %vm1790, %v1882, 0
        %1889 = vmatprep.subr.bf16.mxu0 0
        %1890 = vmatpush1.bf16.msra.mxu0 %v1887
        %1891 = vmatprep.subr.bf16.mxu0 0
        %1892 = vmatpush1.bf16.msra.mxu0 0
        %1893 = vmatprep.subr.bf16.mxu0 0
        %1894 = vmatpush1.bf16.msra.mxu0 0
        %1895 = vmatprep.subr.bf16.mxu0 0
        %1896 = vmatpush1.bf16.msra.mxu0 0
        %1897 = vmatprep.subr.bf16.mxu0 0
        %1898 = vmatpush1.bf16.msra.mxu0 0
        %1899 = vmatprep.subr.bf16.mxu0 0
        %1900 = vmatpush1.bf16.msra.mxu0 0
        %1901 = vmatprep.subr.bf16.mxu0 0
        %1902 = vmatpush1.bf16.msra.mxu0 0
        %1903 = vmatprep.subr.bf16.mxu0 0
        %1904 = vmatpush1.bf16.msra.mxu0 0
        %1905 = vmatprep.subr.bf16.mxu0 0
        %1906 = vmatpush1.bf16.msra.mxu0 0
        %1907 = vmatprep.subr.bf16.mxu0 0
        %1908 = vmatpush1.bf16.msra.mxu0 0
        %1909 = vmatprep.subr.bf16.mxu0 0
        %1910 = vmatpush1.bf16.msra.mxu0 0
        %1911 = vmatprep.subr.bf16.mxu0 0
        %1912 = vmatpush1.bf16.msra.mxu0 0
        %1913 = vmatprep.subr.bf16.mxu0 0
        %1914 = vmatpush1.bf16.msra.mxu0 0
        %1915 = vmatprep.subr.bf16.mxu0 0
        %1916 = vmatpush1.bf16.msra.mxu0 0
        %1917 = vmatprep.subr.bf16.mxu0 0
        %1918 = vmatpush1.bf16.msra.mxu0 0
        %1919 = vmatprep.subr.bf16.mxu0 0
        %1920 = vmatpush1.bf16.msra.mxu0 0
        %1921 = vmatprep.mubr.bf16.mxu0 0
        %1922 = vmatmul.mubr.bf16.gmra.mrb[0].mxu0 %v1884
        %v1923 = vpop.f32.mrb[0].mxu0
        %v1924 = vadd.f32 0.0, %v1923
        %v1925 = vpop.f32.mrb[0].mxu0
        %v1926 = vpop.f32.mrb[0].mxu0
        %v1927 = vadd.f32 0.0, %v1926
        %v1928 = vpop.f32.mrb[0].mxu0
        %1929 = vdwg.mxu0
        %v1930 = vadd.f32 %v1876, %v1924
        %v1931 = vadd.f32 %v1879, %v1927
        %v1932 = vld [vmem:[#allocation8 + $0xc] sm:$0xf]
        %v1934 = vsel %vm786, %v1784, 0
        %v1937 = vsel %vm1790, %v1932, 0
        %1939 = vmatprep.subr.bf16.mxu0 0
        %1940 = vmatpush1.bf16.msra.mxu0 %v1937
        %1941 = vmatprep.subr.bf16.mxu0 0
        %1942 = vmatpush1.bf16.msra.mxu0 0
        %1943 = vmatprep.subr.bf16.mxu0 0
        %1944 = vmatpush1.bf16.msra.mxu0 0
        %1945 = vmatprep.subr.bf16.mxu0 0
        %1946 = vmatpush1.bf16.msra.mxu0 0
        %1947 = vmatprep.subr.bf16.mxu0 0
        %1948 = vmatpush1.bf16.msra.mxu0 0
        %1949 = vmatprep.subr.bf16.mxu0 0
        %1950 = vmatpush1.bf16.msra.mxu0 0
        %1951 = vmatprep.subr.bf16.mxu0 0
        %1952 = vmatpush1.bf16.msra.mxu0 0
        %1953 = vmatprep.subr.bf16.mxu0 0
        %1954 = vmatpush1.bf16.msra.mxu0 0
        %1955 = vmatprep.subr.bf16.mxu0 0
        %1956 = vmatpush1.bf16.msra.mxu0 0
        %1957 = vmatprep.subr.bf16.mxu0 0
        %1958 = vmatpush1.bf16.msra.mxu0 0
        %1959 = vmatprep.subr.bf16.mxu0 0
        %1960 = vmatpush1.bf16.msra.mxu0 0
        %1961 = vmatprep.subr.bf16.mxu0 0
        %1962 = vmatpush1.bf16.msra.mxu0 0
        %1963 = vmatprep.subr.bf16.mxu0 0
        %1964 = vmatpush1.bf16.msra.mxu0 0
        %1965 = vmatprep.subr.bf16.mxu0 0
        %1966 = vmatpush1.bf16.msra.mxu0 0
        %1967 = vmatprep.subr.bf16.mxu0 0
        %1968 = vmatpush1.bf16.msra.mxu0 0
        %1969 = vmatprep.subr.bf16.mxu0 0
        %1970 = vmatpush1.bf16.msra.mxu0 0
        %1971 = vmatprep.mubr.bf16.mxu0 0
        %1972 = vmatmul.mubr.bf16.gmra.mrb[0].mxu0 %v1934
        %v1973 = vpop.f32.mrb[0].mxu0
        %v1974 = vadd.f32 0.0, %v1973
        %v1975 = vpop.f32.mrb[0].mxu0
        %v1976 = vpop.f32.mrb[0].mxu0
        %v1977 = vadd.f32 0.0, %v1976
        %v1978 = vpop.f32.mrb[0].mxu0
        %1979 = vdwg.mxu0
        %v1980 = vadd.f32 %v1930, %v1974
        %v1981 = vadd.f32 %v1931, %v1977
        %s1982 = scalar_lea.vmem %s351, %s396 [#allocation5]
        %v1983 = vld [vmem:[%s1982] sm:$0xff]
        %v1984 = vld [vmem:[%s1982 + $0x8] sm:$0xff]
        %v1985 = vadd.f32 %v1983, %v1980
        %v1986 = vadd.f32 %v1984, %v1981
        %v1987 = vld [vmem:[%s6] sm:$0x1]
        %v1988 = vmul.f32 %v1985, %v1985
        %v1989 = vmul.f32 %v1986, %v1986
        %vm1990 = vcmask 261120
        %v1991 = vsel %vm1990, %v1988, 0.0
        %1992 = vadd.xlane.f32.xlu0 %v1991
        %v1993 = vpop.xlane.xlu0 %1992
        %v1994 = vsel %vm1990, %v1989, 0.0
        %1995 = vadd.xlane.f32.xlu0 %v1994
        %v1996 = vpop.xlane.xlu0 %1995
        %v1997 = vrcp.pop 32.0
        %v1998 = vmul.f32 %v1993, %v1997
        %v1999 = vmul.f32 %v1996, %v1997
        %v2000 = vadd.f32 %v1998, 1e-05
        %v2001 = vadd.f32 %v1999, 1e-05
        %v2002 = vrsqrt.pop %v2000
        %v2003 = vrsqrt.pop %v2001
        %v2004 = vmul.f32 %v1985, %v2002
        %v2005 = vmul.f32 %v1986, %v2003
        %v2007 = vlaneseq
        %v2008 = vshrl.u32 %v2007, 7
        %v2009 = vsub.s32 0, %v2008
        %v2010 = vrot.slane %v1987, %v2009
        %v2012 = vmul.f32 %v2004, %v2010
        %v2013 = vmul.f32 %v2005, %v2010
        %v2014 = vpack.c.bf16 %v2013, %v2012
        %v2015 = vld [vmem:[#allocation10] sm:$0xf]
        %v2016 = vld [vmem:[#allocation10 + $0x4] sm:$0xf]
        %v2017 = vld [vmem:[#allocation10 + $0x8] sm:$0xf]
        %v2018 = vld [vmem:[#allocation10 + $0xc] sm:$0xf]
        %v2023 = vunpack.c.l.b16 %v2015
        %v2024 = vunpack.c.l.b16 %v2016
        %v2025 = vunpack.c.l.b16 %v2017
        %v2026 = vunpack.c.l.b16 %v2018
        %v2027 = vpack.c.b16 %v2024, %v2023
        %v2028 = vpack.c.b16 %v2026, %v2025
        %v2032 = vsel %vm1990, %v2014, 0
        %2034 = vmatprep.subr.bf16.mxu0 0
        %2035 = vmatpush1.bf16.msra.mxu0 %v2027
        %2036 = vmatprep.subr.bf16.mxu0 0
        %2037 = vmatpush1.bf16.msra.mxu0 %v2028
        %2038 = vmatprep.subr.bf16.mxu0 0
        %2039 = vmatpush1.bf16.msra.mxu0 0
        %2040 = vmatprep.subr.bf16.mxu0 0
        %2041 = vmatpush1.bf16.msra.mxu0 0
        %2042 = vmatprep.subr.bf16.mxu0 0
        %2043 = vmatpush1.bf16.msra.mxu0 0
        %2044 = vmatprep.subr.bf16.mxu0 0
        %2045 = vmatpush1.bf16.msra.mxu0 0
        %2046 = vmatprep.subr.bf16.mxu0 0
        %2047 = vmatpush1.bf16.msra.mxu0 0
        %2048 = vmatprep.subr.bf16.mxu0 0
        %2049 = vmatpush1.bf16.msra.mxu0 0
        %2050 = vmatprep.subr.bf16.mxu0 0
        %2051 = vmatpush1.bf16.msra.mxu0 0
        %2052 = vmatprep.subr.bf16.mxu0 0
        %2053 = vmatpush1.bf16.msra.mxu0 0
        %2054 = vmatprep.subr.bf16.mxu0 0
        %2055 = vmatpush1.bf16.msra.mxu0 0
        %2056 = vmatprep.subr.bf16.mxu0 0
        %2057 = vmatpush1.bf16.msra.mxu0 0
        %2058 = vmatprep.subr.bf16.mxu0 0
        %2059 = vmatpush1.bf16.msra.mxu0 0
        %2060 = vmatprep.subr.bf16.mxu0 0
        %2061 = vmatpush1.bf16.msra.mxu0 0
        %2062 = vmatprep.subr.bf16.mxu0 0
        %2063 = vmatpush1.bf16.msra.mxu0 0
        %2064 = vmatprep.subr.bf16.mxu0 0
        %2065 = vmatpush1.bf16.msra.mxu0 0
        %2066 = vmatprep.mubr.bf16.mxu0 0
        %2067 = vmatmul.mubr.bf16.gmra.mrb[0].mxu0 %v2032
        %v2068 = vpop.f32.mrb[0].mxu0
        %v2069 = vadd.f32 0.0, %v2068
        %v2070 = vpop.f32.mrb[0].mxu0
        %v2071 = vpop.f32.mrb[0].mxu0
        %v2072 = vadd.f32 0.0, %v2071
        %v2073 = vpop.f32.mrb[0].mxu0
        %2074 = vdwg.mxu0
        %v2075 = vmul.f32 %v2069, 0.5
        %v2076 = vmul.f32 %v2072, 0.5
        %v2077 = vmul.f32 %v2069, %v2069
        %v2078 = vmul.f32 %v2072, %v2072
        %v2079 = vmul.f32 %v2077, %v2069
        %v2080 = vmul.f32 %v2078, %v2072
        %v2081 = vmul.f32 %v2079, 0.044715
        %v2082 = vmul.f32 %v2080, 0.044715
        %v2083 = vadd.f32 %v2069, %v2081
        %v2084 = vadd.f32 %v2072, %v2082
        %v2085 = vmul.f32 %v2083, 0.7978846
        %v2086 = vmul.f32 %v2084, 0.7978846
        %v2087 = vtanh.pop %v2085
        %v2088 = vtanh.pop %v2086
        %v2089 = vadd.f32 %v2087, 1.0
        %v2090 = vadd.f32 %v2088, 1.0
        %v2091 = vmul.f32 %v2075, %v2089
        %v2092 = vmul.f32 %v2076, %v2090
        %v2093 = vpack.c.bf16 %v2092, %v2091
        %v2094 = vld [vmem:[%s8] sm:$0xf]
        %v2095 = vld [vmem:[%s8 + $0x4] sm:$0xf]
        %v2096 = vld [vmem:[%s8 + $0x8] sm:$0xf]
        %v2097 = vld [vmem:[%s8 + $0xc] sm:$0xf]
        %v2098 = vld [vmem:[%s8 + $0x10] sm:$0xf]
        %v2099 = vld [vmem:[%s8 + $0x14] sm:$0xf]
        %v2100 = vld [vmem:[%s8 + $0x18] sm:$0xf]
        %v2101 = vld [vmem:[%s8 + $0x1c] sm:$0xf]
        %v2110 = vunpack.c.l.b16 %v2094
        %v2111 = vunpack.c.l.b16 %v2095
        %v2112 = vunpack.c.l.b16 %v2096
        %v2113 = vunpack.c.l.b16 %v2097
        %v2114 = vunpack.c.l.b16 %v2098
        %v2115 = vunpack.c.l.b16 %v2099
        %v2116 = vunpack.c.l.b16 %v2100
        %v2117 = vunpack.c.l.b16 %v2101
        %v2118 = vpack.c.b16 %v2111, %v2110
        %v2119 = vpack.c.b16 %v2113, %v2112
        %v2120 = vpack.c.b16 %v2115, %v2114
        %v2121 = vpack.c.b16 %v2117, %v2116
        %vm2126 = vcmask 523264
        %v2128 = vsel %vm2126, %v2093, 0
        %2130 = vmatprep.subr.bf16.mxu0 0
        %2131 = vmatpush1.bf16.msra.mxu0 %v2118
        %2132 = vmatprep.subr.bf16.mxu0 0
        %2133 = vmatpush1.bf16.msra.mxu0 %v2119
        %2134 = vmatprep.subr.bf16.mxu0 0
        %2135 = vmatpush1.bf16.msra.mxu0 %v2120
        %2136 = vmatprep.subr.bf16.mxu0 0
        %2137 = vmatpush1.bf16.msra.mxu0 %v2121
        %2138 = vmatprep.subr.bf16.mxu0 0
        %2139 = vmatpush1.bf16.msra.mxu0 0
        %2140 = vmatprep.subr.bf16.mxu0 0
        %2141 = vmatpush1.bf16.msra.mxu0 0
        %2142 = vmatprep.subr.bf16.mxu0 0
        %2143 = vmatpush1.bf16.msra.mxu0 0
        %2144 = vmatprep.subr.bf16.mxu0 0
        %2145 = vmatpush1.bf16.msra.mxu0 0
        %2146 = vmatprep.subr.bf16.mxu0 0
        %2147 = vmatpush1.bf16.msra.mxu0 0
        %2148 = vmatprep.subr.bf16.mxu0 0
        %2149 = vmatpush1.bf16.msra.mxu0 0
        %2150 = vmatprep.subr.bf16.mxu0 0
        %2151 = vmatpush1.bf16.msra.mxu0 0
        %2152 = vmatprep.subr.bf16.mxu0 0
        %2153 = vmatpush1.bf16.msra.mxu0 0
        %2154 = vmatprep.subr.bf16.mxu0 0
        %2155 = vmatpush1.bf16.msra.mxu0 0
        %2156 = vmatprep.subr.bf16.mxu0 0
        %2157 = vmatpush1.bf16.msra.mxu0 0
        %2158 = vmatprep.subr.bf16.mxu0 0
        %2159 = vmatpush1.bf16.msra.mxu0 0
        %2160 = vmatprep.subr.bf16.mxu0 0
        %2161 = vmatpush1.bf16.msra.mxu0 0
        %2162 = vmatprep.mubr.bf16.mxu0 0
        %2163 = vmatmul.mubr.bf16.gmra.mrb[0].mxu0 %v2128
        %v2164 = vpop.f32.mrb[0].mxu0
        %v2165 = vadd.f32 0.0, %v2164
        %v2166 = vpop.f32.mrb[0].mxu0
        %v2167 = vpop.f32.mrb[0].mxu0
        %v2168 = vadd.f32 0.0, %v2167
        %v2169 = vpop.f32.mrb[0].mxu0
        %2170 = vdwg.mxu0
        %v2171 = vadd.f32 %v1985, %v2165
        %v2172 = vadd.f32 %v1986, %v2168
        %2173 = vst.msk [vmem:[%s393] sm:$0xff] %vm1990, %v2171
        %2174 = vst.msk [vmem:[%s393 + $0x8] sm:$0xff] %vm1990, %v2172
        %s2175 = sand.u32 %s243, 1
        %s2176 = scalar_lea.sflag [#allocation7], %s2175
        %s2177 = sand.u32 %s243, 1
        %s2178 = smul.addr %s2177, 16
        %s2179 = scalar_lea.vmem [#allocation11], %s2178
        // Predicated region
        $region80: #{tpu_custom_call.1} parent=55 // pred_check
          %p2180 = pneg %p253
        $region81: #{tpu_custom_call.1} parent=55 // pred_check_branch
          %2182 = sbr.rel (%p2180) target = $region83
        $region82: #{tpu_custom_call.1} parent=55 // pred_region
          %s2183 = smul.u32 2, %s32
          %s2185 = ssub.s32 256, 256
          %2186 = vsyncadd %s2176, %s2185
          %s2187 = smul.addr %s31, 4
          %s2188 = sadd.s32 %s2183, %s2187
          %s2189 = smul.addr %s2188, 128
          %s2190 = scalar_lea.hbm %s9, %s2189
          %s2191 = sshll.u32 %s2179, 4
          %s2192 = int_to_ptr.vmem [resolvable:$true] %s2191
          %2197 = dma.vmem_to_hbm [thread:$0]  %s2192, 256, %s2190, %s2176, 128, 128, 8
        $region83: #{tpu_custom_call.1} parent=55 // pred_fallthru
          _
      $region56: #{tpu_custom_call.1} parent=5 // pred_fallthru
        _
      %p2198 = scmp.le.s32.totalorder 2, %s22
      // Predicated region
      $region84: #{tpu_custom_call.1} parent=5 // pred_check
        %p2199 = pneg %p2198
      $region85: #{tpu_custom_call.1} parent=5 // pred_check_branch
        %2201 = sbr.rel (%p2199) target = $region87
      $region86: #{tpu_custom_call.1} parent=5 // pred_region
        %s2202 = ssub.s32 %s22, 2
        // Predicated region
        $region88: #{tpu_custom_call.1} parent=86 // pred_check
          %p2203 = pneg %p259
        $region89: #{tpu_custom_call.1} parent=86 // pred_check_branch
          %2205 = sbr.rel (%p2203) target = $region91
        $region90: #{tpu_custom_call.1} parent=86 // pred_region
          %s2206 = sand.u32 %s244, 1
          %s2207 = scalar_lea.sflag [#allocation7], %s2206
          %s2208 = sand.u32 %s244, 1
          %s2209 = smul.addr %s2208, 16
          %s2210 = scalar_lea.vmem [#allocation11], %s2209
          %2211 = dma.done %s2207, 256
        $region91: #{tpu_custom_call.1} parent=86 // pred_fallthru
          _
      $region87: #{tpu_custom_call.1} parent=5 // pred_fallthru
        _
    $region6: #{tpu_custom_call.1} parent=1 // loop_footer
      %s26 = sadd.s32 1, %s22
    $region7: #{tpu_custom_call.1} parent=1 // loop_footer_branch
      %21 = sbr.rel target = $region3
    $region8: #{tpu_custom_call.1} parent=1 // loop_exit
      _
    %2212 = vsyncpa [#allocation6], 1
    %s2213 = scalar_lea.sflag [#allocation6], 1
    %2214 = vsyncpa %s2213, 1
    %2215 = vsyncpa [#allocation9], 1
    %2216 = vsyncpa [#allocation7], 1
    %s2217 = scalar_lea.sflag [#allocation7], 1
    %2218 = vsyncpa %s2217, 1

</llo_original>
